<compile_context>
chip_gen: v7x
topology: tpu7x:2x2x1
jax: 0.10.0
libtpu: 0.0.40
codegen_flags: <defaults>
</compile_context>

<pallas_src>
import numpy as np
import jax
import jax.numpy as jnp
from jax.experimental import pallas as pl
from jax.experimental.pallas import tpu as pltpu

LEAKY_SLOPE = 0.01
BN_EPS = 1e-5
HALO = 8          # top halo rows in the staging scratches (keeps data stores sublane-aligned)


# ----------------------------------------------------------------------------
# Host-side helpers (weight-space precompute -- zero runtime cost)
# ----------------------------------------------------------------------------
def bilinear_matrix(in_size):
    """x2 bilinear upsample weights (PyTorch align_corners=False), (2*in, in)."""
    out_size = 2 * in_size
    i = np.arange(out_size, dtype=np.float64)
    src = np.clip((i + 0.5) / 2.0 - 0.5, 0.0, None)
    i0 = np.minimum(np.floor(src).astype(np.int64), in_size - 1)
    i1 = np.minimum(i0 + 1, in_size - 1)
    frac = src - i0
    M = np.zeros((out_size, in_size), dtype=np.float32)
    M[np.arange(out_size), i0] += (1.0 - frac).astype(np.float32)
    M[np.arange(out_size), i1] += frac.astype(np.float32)
    return M


def prep_operands(p, N, H, W):
    """Fold (horizontal bilinear x2) o (1x1 conv) o (3x3 taps) into banded
    lane->lane matrices, arranged for the kernel's parity-in-lanes staging."""
    w1 = np.asarray(p["w1"], np.float32)            # (Cin, Co)  1x1 conv
    b1 = np.asarray(p["b1"], np.float32)            # (Co,)
    wc1 = np.asarray(p["wc1"], np.float32)          # (3,3,2Co,Co) HWIO
    bc1 = np.asarray(p["bc1"], np.float32)
    wc2 = np.asarray(p["wc2"], np.float32)          # (3,3,Co,Co)
    bc2 = np.asarray(p["bc2"], np.float32)
    Cin, Co = w1.shape
    H2, W2 = 2 * H, 2 * W
    LX, L = W * Cin, W2 * Co

    u = bilinear_matrix(W)                          # (W2, W) horizontal upsample

    # horizontal-tap selectors with the conv's zero-padding border baked in
    u_ext = np.zeros((3, W2, W), np.float32)        # upsample composed with tap dx
    e_ext = np.zeros((3, W2, W2), np.float32)       # plain tap dx (skip / conv2)
    for dx in range(3):
        for q in range(W2):
            src = q + dx - 1
            if 0 <= src < W2:
                u_ext[dx, q, :] = u[src, :]
                e_ext[dx, q, src] = 1.0

    # fold the 1x1 conv weight into the "up" half of conv1
    wfold = np.einsum("io,yxoc->yxic", w1, wc1[:, :, :Co, :])        # (3,3,Cin,Co)

    A = [np.einsum("xpw,xic->wipc", u_ext, wfold[dy]).reshape(LX, L)
         for dy in range(3)]                        # acts on vertically-upsampled x rows
    B = [np.einsum("xpq,xsc->qspc", e_ext, wc1[dy, :, Co:, :]).reshape(L, L)
         for dy in range(3)]                        # acts on skip rows
    C = [np.einsum("xpq,xsc->qspc", e_ext, wc2[dy]).reshape(L, L)
         for dy in range(3)]                        # conv2

    # conv1 staging row lane order is [ve | sk_e | vo | sk_o]:
    #   even out row i uses  ve[i]->A1, sk_e[i]->B1, vo[i]->A2, sk_o[i]->B2  (+ row i-1 [vo|sk_o] -> A0,B0)
    #   odd  out row i uses  ve[i]->A0, sk_e[i]->B0, vo[i]->A1, sk_o[i]->B1  (+ row i+1 [ve|sk_e] -> A2,B2)
    # even/odd full-row weights stacked along the OUTPUT axis -> one wide MXU dot.
    w1f = np.concatenate([np.concatenate([A[1], B[1], A[2], B[2]], axis=0),
                          np.concatenate([A[0], B[0], A[1], B[1]], axis=0)],
                         axis=1)                                     # (2*(LX+L), 2L)
    w1h = np.stack([np.concatenate([A[0], B[0]], axis=0),            # even, row i-1 [vo|sk_o]
                    np.concatenate([A[2], B[2]], axis=0)])           # odd,  row i+1 [ve|sk_e]
    # conv2 staging row lane order is [z1e | z1o]:
    w2f = np.concatenate([np.concatenate([C[1], C[2]], axis=0),
                          np.concatenate([C[0], C[1]], axis=0)], axis=1)   # (2L, 2L)
    w2h = np.stack([C[0], C[2]])                                     # (2, L, L)

    # exact conv1 bias map: conv bias + folded 1x1 bias (zero-pad-border aware)
    t = np.einsum("o,yxoc->yxc", b1, wc1[:, :, :Co, :])              # (3,3,Co)
    vv = np.array([[1.0 if 0 <= j + dy - 1 < H2 else 0.0 for dy in range(3)]
                   for j in range(H2)], np.float32)                  # (H2,3)
    hv = np.array([[1.0 if 0 <= q + dx - 1 < W2 else 0.0 for dx in range(3)]
                   for q in range(W2)], np.float32)                  # (W2,3)
    bias1 = (np.einsum("jy,px,yxc->jpc", vv, hv, t)
             + bc1[None, None, :]).reshape(H2, L)                    # (H2, L)

    lane = lambda v: np.tile(np.asarray(v, np.float32), W2)[None, :]      # (1, L)
    inv_count = 1.0 / float(N * H2 * W2)
    S = (np.arange(L)[:, None] % Co == np.arange(L)[None, :] % Co).astype(np.float32)

    return dict(
        w1f=jnp.asarray(w1f, jnp.bfloat16), w1h=jnp.asarray(w1h, jnp.bfloat16),
        w2f=jnp.asarray(w2f, jnp.bfloat16), w2h=jnp.asarray(w2h, jnp.bfloat16),
        b1e=jnp.asarray(bias1[0::2]), b1o=jnp.asarray(bias1[1::2]),   # (H, L) each
        b2=jnp.asarray(lane(bc2)),
        g1=jnp.asarray(lane(p["g1"])), be1=jnp.asarray(lane(p["be1"])),
        g2=jnp.asarray(lane(p["g2"])), be2=jnp.asarray(lane(p["be2"])),
        S=jnp.asarray(S * inv_count),                                 # 1/count folded in (f32)
    )


# ----------------------------------------------------------------------------
# Fused Pallas kernel
# ----------------------------------------------------------------------------
def _make_kernel(N, H, LX, L):
    CH = LX + L          # one parity's lane width in the conv1 staging rows
    CF = 2 * CH          # full conv1 staging row width  [ve | sk_e | vo | sk_o]
    NH = N * H
    PT = HALO            # data rows live at PT..PT+H-1; zero halo rows at PT-1, PT+H

    def kernel(x_ref, skip_ref, w1f_ref, w1h_ref, w2f_ref, w2h_ref,
               b1e_ref, b1o_ref, b2_ref, g1_ref, be1_ref, g2_ref, be2_ref,
               s_ref, out_ref, cs1_ref, cs2_ref):
        f32, bf16 = jnp.float32, jnp.bfloat16
        leaky = lambda a: jnp.where(a >= 0, a, LEAKY_SLOPE * a)
        dot = lambda a, b: jnp.dot(a, b, preferred_element_type=f32)

        # ---- bilinear x2, vertical direction: VPU weighted adds (edge clamp) ----
        x = x_ref[...]                                                # (N, H, LX) f32
        xp = jnp.concatenate([x[:, :1, :], x[:, :-1, :]], axis=1)
        xn = jnp.concatenate([x[:, 1:, :], x[:, -1:, :]], axis=1)
        ve = (0.75 * x + 0.25 * xp).astype(bf16)                      # upsampled rows 2i
        vo = (0.75 * x + 0.25 * xn).astype(bf16)                      # upsampled rows 2i+1

        # ---- stage conv1 operand rows once (bf16, zero halos) ----
        sk = skip_ref[...].astype(bf16)                               # (N, H, 2L): [sk_e | sk_o]
        zrow = jnp.zeros((N, 1, CF), bf16)
        cs1_ref[:, PT - 1:PT, :] = zrow
        cs1_ref[:, PT + H:PT + H + 1, :] = zrow
        cs1_ref[:, PT:PT + H, 0:LX] = ve
        cs1_ref[:, PT:PT + H, LX:CH] = sk[:, :, 0:L]
        cs1_ref[:, PT:PT + H, CH:CH + LX] = vo
        cs1_ref[:, PT:PT + H, CH + LX:CF] = sk[:, :, L:2 * L]

        S = s_ref[...]                                                # (L, L) f32, 1/count folded

        def batchnorm(ze, zo, g, be):
            # training-mode BatchNorm2d, two-pass (mean, then centered sum-sq).
            s = jnp.sum(ze, axis=0, keepdims=True) + jnp.sum(zo, axis=0, keepdims=True)
            mean = dot(s, S)                                          # per-channel mean, per lane
            de, do = ze - mean, zo - mean
            q = (jnp.sum(de * de, axis=0, keepdims=True)
                 + jnp.sum(do * do, axis=0, keepdims=True))
            scale = jax.lax.rsqrt(dot(q, S) + BN_EPS) * g
            return de * scale + be, do * scale + be

        # ---- conv1 (3x3; horiz upsample + 1x1 conv + bias folded on host) ----
        full1 = cs1_ref[:, PT:PT + H, :].reshape(NH, CF)              # shared operand
        yb = dot(full1, w1f_ref[...])                                 # (NH, 2L): even | odd
        y1e = yb[:, 0:L] + dot(cs1_ref[:, PT - 1:PT - 1 + H, CH:CF].reshape(NH, CH),
                               w1h_ref[0])
        y1o = yb[:, L:2 * L] + dot(cs1_ref[:, PT + 1:PT + 1 + H, 0:CH].reshape(NH, CH),
                                   w1h_ref[1])
        y1e = (y1e.reshape(N, H, L) + b1e_ref[...]).reshape(NH, L)    # bias broadcast over N
        y1o = (y1o.reshape(N, H, L) + b1o_ref[...]).reshape(NH, L)
        z1e, z1o = batchnorm(leaky(y1e), leaky(y1o), g1_ref[...], be1_ref[...])

        # ---- stage conv2 operand rows [z1e | z1o] (bf16, zero halos) ----
        zrow2 = jnp.zeros((N, 1, 2 * L), bf16)
        cs2_ref[:, PT - 1:PT, :] = zrow2
        cs2_ref[:, PT + H:PT + H + 1, :] = zrow2
        cs2_ref[:, PT:PT + H, 0:L] = z1e.astype(bf16).reshape(N, H, L)
        cs2_ref[:, PT:PT + H, L:2 * L] = z1o.astype(bf16).reshape(N, H, L)

        # ---- conv2 (3x3) ----
        full2 = cs2_ref[:, PT:PT + H, :].reshape(NH, 2 * L)
        yb2 = dot(full2, w2f_ref[...])                                # (NH, 2L): even | odd
        y2e = yb2[:, 0:L] + dot(cs2_ref[:, PT - 1:PT - 1 + H, L:2 * L].reshape(NH, L),
                                w2h_ref[0]) + b2_ref[...]
        y2o = yb2[:, L:2 * L] + dot(cs2_ref[:, PT + 1:PT + 1 + H, 0:L].reshape(NH, L),
                                    w2h_ref[1]) + b2_ref[...]
        z2e, z2o = batchnorm(leaky(y2e), leaky(y2o), g2_ref[...], be2_ref[...])

        # lane-dense output: even|odd H2-rows in the two lane halves (full-width stores)
        out_ref[:, 0:L] = z2e
        out_ref[:, L:2 * L] = z2o

    return kernel


# ----------------------------------------------------------------------------
# Wrapper: one pallas_call, lane-dense in / lane-dense out (no transposes)
# ----------------------------------------------------------------------------
def up_conv_block(x_rows, skip_eo, ops):
    """x_rows: (N, H, W*Cin) f32;  skip_eo: (N, H, 2*W2*Co) f32 (even|odd H2-rows
    in the lane halves -- a free reshape of the (N, H2, W2*Co) row layout).
    Returns (N*H, 2*W2*Co) f32; reshape to (N, H2, W2, Co) is free."""
    N, H, LX = x_rows.shape
    L = skip_eo.shape[2] // 2
    NH = N * H
    kernel = _make_kernel(N, H, LX, L)

    args = (x_rows, skip_eo, ops["w1f"], ops["w1h"], ops["w2f"], ops["w2h"],
            ops["b1e"], ops["b1o"], ops["b2"],
            ops["g1"], ops["be1"], ops["g2"], ops["be2"], ops["S"])

    def full(a):
        return pl.BlockSpec(a.shape, lambda i, n=a.ndim: (0,) * n)

    return pl.pallas_call(
        kernel,
        out_shape=jax.ShapeDtypeStruct((NH, 2 * L), jnp.float32),
        grid=(1,),
        in_specs=[full(a) for a in args],
        out_specs=pl.BlockSpec((NH, 2 * L), lambda i: (0, 0)),
        scratch_shapes=[
            pltpu.VMEM((N, HALO + H + 1, 2 * (LX + L)), jnp.bfloat16),   # conv1 staging
            pltpu.VMEM((N, HALO + H + 1, 2 * L), jnp.bfloat16),          # conv2 staging
        ],
        compiler_params=pltpu.CompilerParams(dimension_semantics=("arbitrary",)),
    )(*args)


# ----------------------------------------------------------------------------
# Pure-JAX reference (PyTorch semantics) for the correctness check
# ----------------------------------------------------------------------------
def reference(x_nchw, skip_nchw, p):
    x = jnp.transpose(x_nchw, (0, 2, 3, 1))
    skip = jnp.transpose(skip_nchw, (0, 2, 3, 1))
    H, W = x.shape[1], x.shape[2]
    Uh = jnp.asarray(bilinear_matrix(H))
    Uw = jnp.asarray(bilinear_matrix(W))
    up = jnp.einsum("ph,nhwc->npwc", Uh, x)
    up = jnp.einsum("qw,npwc->npqc", Uw, up)
    upc = up @ p["w1"] + p["b1"]
    out = jnp.concatenate([upc, skip], axis=-1)

    def block(o, w, b, g, be):
        o = jax.lax.conv_general_dilated(
            o, w, (1, 1), "SAME", dimension_numbers=("NHWC", "HWIO", "NHWC")) + b
        o = jnp.where(o >= 0, o, LEAKY_SLOPE * o)
        mean = o.mean(axis=(0, 1, 2), keepdims=True)
        var = jnp.square(o - mean).mean(axis=(0, 1, 2), keepdims=True)
        return (o - mean) * jax.lax.rsqrt(var + BN_EPS) * g + be

    out = block(out, p["wc1"], p["bc1"], p["g1"], p["be1"])
    out = block(out, p["wc2"], p["bc2"], p["g2"], p["be2"])
    return jnp.transpose(out, (0, 3, 1, 2))


# ----------------------------------------------------------------------------
def init_params(key, inp_c, out_c):
    ks = jax.random.split(key, 10)
    return {
        # UpsampleBlock 1x1 conv: (Cin, Cout)
        "w1": 0.2 * jax.random.normal(ks[0], (inp_c, out_c), jnp.float32),
        "b1": 0.1 * jax.random.normal(ks[1], (out_c,), jnp.float32),
        # ConvBlock conv1 (HWIO): (3,3, 2*out_c, out_c)
        "wc1": 0.2 * jax.random.normal(ks[2], (3, 3, 2 * out_c, out_c), jnp.float32),
        "bc1": 0.1 * jax.random.normal(ks[3], (out_c,), jnp.float32),
        "g1": 1.0 + 0.1 * jax.random.normal(ks[4], (out_c,), jnp.float32),
        "be1": 0.1 * jax.random.normal(ks[5], (out_c,), jnp.float32),
        # ConvBlock conv2 (HWIO): (3,3, out_c, out_c)
        "wc2": 0.2 * jax.random.normal(ks[6], (3, 3, out_c, out_c), jnp.float32),
        "bc2": 0.1 * jax.random.normal(ks[7], (out_c,), jnp.float32),
        "g2": 1.0 + 0.1 * jax.random.normal(ks[8], (out_c,), jnp.float32),
        "be2": 0.1 * jax.random.normal(ks[9], (out_c,), jnp.float32),
    }


if __name__ == "__main__":
    key = jax.random.PRNGKey(0)
    kx, ksk, kp = jax.random.split(key, 3)
    inp_c, out_c = 8, 4
    N, H, W = 2, 16, 16
    H2, W2 = 2 * H, 2 * W
    L = W2 * out_c

    x_nchw = jax.random.normal(kx, (N, inp_c, H, W), jnp.float32)
    skip_nchw = jax.random.normal(ksk, (N, out_c, H2, W2), jnp.float32)
    params = init_params(kp, inp_c, out_c)
    ops = prep_operands(params, N, H, W)

    # Demo-only layout conversion; a real pipeline keeps this lane-dense layout
    # between blocks (the (N,H2,L) <-> (N,H,2L) / (N*H,2L) views are free).
    x_rows = jnp.transpose(x_nchw, (0, 2, 3, 1)).reshape(N, H, W * inp_c)
    skip_eo = jnp.transpose(skip_nchw, (0, 2, 3, 1)).reshape(N, H2, L).reshape(N, H, 2 * L)

    fwd = jax.jit(up_conv_block)
    out_rows = jax.block_until_ready(fwd(x_rows, skip_eo, ops))
    assert out_rows.shape == (N * H, 2 * L)

    # (N*H, 2L) -> (N, H2, W2, Co) is a pure metadata reshape; NCHW only for the check.
    out_nchw = jnp.transpose(
        out_rows.reshape(N, H, 2, W2, out_c).reshape(N, H2, W2, out_c), (0, 3, 1, 2))

    ref = jax.block_until_ready(reference(x_nchw, skip_nchw, params))
    # bf16 MXU operands (f32 accumulate) -> widened tolerance
    np.testing.assert_allclose(np.asarray(out_nchw), np.asarray(ref), atol=7.5e-2, rtol=7.5e-2)

    print("KERNEL_OK")
</pallas_src>

<mosaic_0001>
module attributes {stable_mosaic.version = 11 : i64} {
  func.func @kernel(%arg0: i32, %arg1: memref<2x16x128xf32, #tpu.memory_space<vmem>>, %arg2: memref<2x16x256xf32, #tpu.memory_space<vmem>>, %arg3: memref<512x256xbf16, #tpu.memory_space<vmem>>, %arg4: memref<2x256x128xbf16, #tpu.memory_space<vmem>>, %arg5: memref<256x256xbf16, #tpu.memory_space<vmem>>, %arg6: memref<2x128x128xbf16, #tpu.memory_space<vmem>>, %arg7: memref<16x128xf32, #tpu.memory_space<vmem>>, %arg8: memref<16x128xf32, #tpu.memory_space<vmem>>, %arg9: memref<1x128xf32, #tpu.memory_space<vmem>>, %arg10: memref<1x128xf32, #tpu.memory_space<vmem>>, %arg11: memref<1x128xf32, #tpu.memory_space<vmem>>, %arg12: memref<1x128xf32, #tpu.memory_space<vmem>>, %arg13: memref<1x128xf32, #tpu.memory_space<vmem>>, %arg14: memref<128x128xf32, #tpu.memory_space<vmem>>, %arg15: memref<32x256xf32, #tpu.memory_space<vmem>>, %arg16: memref<2x25x512xbf16, #tpu.memory_space<vmem>>, %arg17: memref<2x25x256xbf16, #tpu.memory_space<vmem>>) attributes {dimension_semantics = [#tpu.dimension_semantics<arbitrary>], iteration_bounds = array<i64: 1>, scalar_prefetch = 0 : i64, scratch_operands = 2 : i64, tpu.core_type = #tpu.core_type<tc>, window_params = [{pipeline_mode = #tpu.pipeline_mode<synchronous>, transform_indices = @transform_0, window_bounds = array<i64: 2, 16, 128>}, {pipeline_mode = #tpu.pipeline_mode<synchronous>, transform_indices = @transform_1, window_bounds = array<i64: 2, 16, 256>}, {pipeline_mode = #tpu.pipeline_mode<synchronous>, transform_indices = @transform_2, window_bounds = array<i64: 512, 256>}, {pipeline_mode = #tpu.pipeline_mode<synchronous>, transform_indices = @transform_3, window_bounds = array<i64: 2, 256, 128>}, {pipeline_mode = #tpu.pipeline_mode<synchronous>, transform_indices = @transform_4, window_bounds = array<i64: 256, 256>}, {pipeline_mode = #tpu.pipeline_mode<synchronous>, transform_indices = @transform_5, window_bounds = array<i64: 2, 128, 128>}, {pipeline_mode = #tpu.pipeline_mode<synchronous>, transform_indices = @transform_6, window_bounds = array<i64: 16, 128>}, {pipeline_mode = #tpu.pipeline_mode<synchronous>, transform_indices = @transform_7, window_bounds = array<i64: 16, 128>}, {pipeline_mode = #tpu.pipeline_mode<synchronous>, transform_indices = @transform_8, window_bounds = array<i64: 1, 128>}, {pipeline_mode = #tpu.pipeline_mode<synchronous>, transform_indices = @transform_9, window_bounds = array<i64: 1, 128>}, {pipeline_mode = #tpu.pipeline_mode<synchronous>, transform_indices = @transform_10, window_bounds = array<i64: 1, 128>}, {pipeline_mode = #tpu.pipeline_mode<synchronous>, transform_indices = @transform_11, window_bounds = array<i64: 1, 128>}, {pipeline_mode = #tpu.pipeline_mode<synchronous>, transform_indices = @transform_12, window_bounds = array<i64: 1, 128>}, {pipeline_mode = #tpu.pipeline_mode<synchronous>, transform_indices = @transform_13, window_bounds = array<i64: 128, 128>}, {pipeline_mode = #tpu.pipeline_mode<synchronous>, transform_indices = @transform_14, window_bounds = array<i64: 32, 256>}]} {
    %c0 = arith.constant 0 : index
    %c0_0 = arith.constant 0 : index
    %c0_1 = arith.constant 0 : index
    %0 = vector.load %arg1[%c0, %c0_0, %c0_1] : memref<2x16x128xf32, #tpu.memory_space<vmem>>, vector<2x16x128xf32>
    %1 = vector.extract_strided_slice %0 {offsets = [0, 0, 0], sizes = [2, 1, 128], strides = [1, 1, 1]} : vector<2x16x128xf32> to vector<2x1x128xf32>
    %2 = vector.extract_strided_slice %0 {offsets = [0, 0, 0], sizes = [2, 15, 128], strides = [1, 1, 1]} : vector<2x16x128xf32> to vector<2x15x128xf32>
    %3 = tpu.concatenate %1, %2 in 1 : vector<2x1x128xf32>, vector<2x15x128xf32> -> vector<2x16x128xf32>
    %4 = vector.extract_strided_slice %0 {offsets = [0, 1, 0], sizes = [2, 15, 128], strides = [1, 1, 1]} : vector<2x16x128xf32> to vector<2x15x128xf32>
    %5 = vector.extract_strided_slice %0 {offsets = [0, 15, 0], sizes = [2, 1, 128], strides = [1, 1, 1]} : vector<2x16x128xf32> to vector<2x1x128xf32>
    %6 = tpu.concatenate %4, %5 in 1 : vector<2x15x128xf32>, vector<2x1x128xf32> -> vector<2x16x128xf32>
    %cst = arith.constant 7.500000e-01 : f32
    %7 = vector.broadcast %cst : f32 to vector<2x16x128xf32>
    %8 = arith.mulf %7, %0 : vector<2x16x128xf32>
    %cst_2 = arith.constant 2.500000e-01 : f32
    %9 = vector.broadcast %cst_2 : f32 to vector<2x16x128xf32>
    %10 = arith.mulf %9, %3 : vector<2x16x128xf32>
    %11 = arith.addf %8, %10 : vector<2x16x128xf32>
    %12 = arith.truncf %11 : vector<2x16x128xf32> to vector<2x16x128xbf16>
    %cst_3 = arith.constant 7.500000e-01 : f32
    %13 = vector.broadcast %cst_3 : f32 to vector<2x16x128xf32>
    %14 = arith.mulf %13, %0 : vector<2x16x128xf32>
    %cst_4 = arith.constant 2.500000e-01 : f32
    %15 = vector.broadcast %cst_4 : f32 to vector<2x16x128xf32>
    %16 = arith.mulf %15, %6 : vector<2x16x128xf32>
    %17 = arith.addf %14, %16 : vector<2x16x128xf32>
    %18 = arith.truncf %17 : vector<2x16x128xf32> to vector<2x16x128xbf16>
    %c0_5 = arith.constant 0 : index
    %c0_6 = arith.constant 0 : index
    %c0_7 = arith.constant 0 : index
    %19 = vector.load %arg2[%c0_5, %c0_6, %c0_7] : memref<2x16x256xf32, #tpu.memory_space<vmem>>, vector<2x16x256xf32>
    %20 = arith.truncf %19 : vector<2x16x256xf32> to vector<2x16x256xbf16>
    %cst_8 = arith.constant 0.000000e+00 : bf16
    %21 = vector.broadcast %cst_8 : bf16 to vector<2x1x512xbf16>
    %c0_9 = arith.constant 0 : index
    %c7 = arith.constant 7 : index
    %c0_10 = arith.constant 0 : index
    %22 = vector.load %arg16[%c0_9, %c7, %c0_10] : memref<2x25x512xbf16, #tpu.memory_space<vmem>>, vector<2x1x512xbf16>
    tpu.vector_store %arg16[%c0_9, %c7, %c0_10], %21 {strides = array<i32>} : memref<2x25x512xbf16, #tpu.memory_space<vmem>>, vector<2x1x512xbf16>,
    %c0_11 = arith.constant 0 : index
    %c24 = arith.constant 24 : index
    %c0_12 = arith.constant 0 : index
    %23 = vector.load %arg16[%c0_11, %c24, %c0_12] : memref<2x25x512xbf16, #tpu.memory_space<vmem>>, vector<2x1x512xbf16>
    tpu.vector_store %arg16[%c0_11, %c24, %c0_12], %21 {strides = array<i32>} : memref<2x25x512xbf16, #tpu.memory_space<vmem>>, vector<2x1x512xbf16>,
    %c0_13 = arith.constant 0 : index
    %c8 = arith.constant 8 : index
    %c0_14 = arith.constant 0 : index
    %24 = vector.load %arg16[%c0_13, %c8, %c0_14] : memref<2x25x512xbf16, #tpu.memory_space<vmem>>, vector<2x16x128xbf16>
    tpu.vector_store %arg16[%c0_13, %c8, %c0_14], %12 {strides = array<i32>} : memref<2x25x512xbf16, #tpu.memory_space<vmem>>, vector<2x16x128xbf16>,
    %25 = vector.extract_strided_slice %20 {offsets = [0, 0, 0], sizes = [2, 16, 128], strides = [1, 1, 1]} : vector<2x16x256xbf16> to vector<2x16x128xbf16>
    %c0_15 = arith.constant 0 : index
    %c8_16 = arith.constant 8 : index
    %c128 = arith.constant 128 : index
    %26 = vector.load %arg16[%c0_15, %c8_16, %c128] : memref<2x25x512xbf16, #tpu.memory_space<vmem>>, vector<2x16x128xbf16>
    tpu.vector_store %arg16[%c0_15, %c8_16, %c128], %25 {strides = array<i32>} : memref<2x25x512xbf16, #tpu.memory_space<vmem>>, vector<2x16x128xbf16>,
    %c0_17 = arith.constant 0 : index
    %c8_18 = arith.constant 8 : index
    %c256 = arith.constant 256 : index
    %27 = vector.load %arg16[%c0_17, %c8_18, %c256] : memref<2x25x512xbf16, #tpu.memory_space<vmem>>, vector<2x16x128xbf16>
    tpu.vector_store %arg16[%c0_17, %c8_18, %c256], %18 {strides = array<i32>} : memref<2x25x512xbf16, #tpu.memory_space<vmem>>, vector<2x16x128xbf16>,
    %28 = vector.extract_strided_slice %20 {offsets = [0, 0, 128], sizes = [2, 16, 128], strides = [1, 1, 1]} : vector<2x16x256xbf16> to vector<2x16x128xbf16>
    %c0_19 = arith.constant 0 : index
    %c8_20 = arith.constant 8 : index
    %c384 = arith.constant 384 : index
    %29 = vector.load %arg16[%c0_19, %c8_20, %c384] : memref<2x25x512xbf16, #tpu.memory_space<vmem>>, vector<2x16x128xbf16>
    tpu.vector_store %arg16[%c0_19, %c8_20, %c384], %28 {strides = array<i32>} : memref<2x25x512xbf16, #tpu.memory_space<vmem>>, vector<2x16x128xbf16>,
    %c0_21 = arith.constant 0 : index
    %c0_22 = arith.constant 0 : index
    %30 = vector.load %arg14[%c0_21, %c0_22] : memref<128x128xf32, #tpu.memory_space<vmem>>, vector<128x128xf32>
    %c0_23 = arith.constant 0 : index
    %c8_24 = arith.constant 8 : index
    %c0_25 = arith.constant 0 : index
    %31 = vector.load %arg16[%c0_23, %c8_24, %c0_25] : memref<2x25x512xbf16, #tpu.memory_space<vmem>>, vector<2x16x512xbf16>
    %32 = vector.shape_cast %31 : vector<2x16x512xbf16> to vector<32x512xbf16>
    %c0_26 = arith.constant 0 : index
    %c0_27 = arith.constant 0 : index
    %33 = vector.load %arg3[%c0_26, %c0_27] : memref<512x256xbf16, #tpu.memory_space<vmem>>, vector<512x256xbf16>
    %cst_28 = arith.constant dense<0.000000e+00> : vector<32x256xf32>
    %34 = tpu.matmul %32, %33, %cst_28 {dimension_numbers = #tpu.dot_dimension_numbers<[1], [0], [0], [1], [0, 0, 1, 1], [], []>} : vector<32x512xbf16>, vector<512x256xbf16>, vector<32x256xf32> -> vector<32x256xf32>
    %35 = vector.extract_strided_slice %34 {offsets = [0, 0], sizes = [32, 128], strides = [1, 1]} : vector<32x256xf32> to vector<32x128xf32>
    %c0_29 = arith.constant 0 : index
    %c7_30 = arith.constant 7 : index
    %c256_31 = arith.constant 256 : index
    %36 = vector.load %arg16[%c0_29, %c7_30, %c256_31] : memref<2x25x512xbf16, #tpu.memory_space<vmem>>, vector<2x16x256xbf16>
    %37 = vector.shape_cast %36 : vector<2x16x256xbf16> to vector<32x256xbf16>
    %c0_32 = arith.constant 0 : index
    %c0_33 = arith.constant 0 : index
    %c0_34 = arith.constant 0 : index
    %38 = vector.load %arg4[%c0_32, %c0_33, %c0_34] : memref<2x256x128xbf16, #tpu.memory_space<vmem>>, vector<1x256x128xbf16>
    %39 = vector.shape_cast %38 : vector<1x256x128xbf16> to vector<256x128xbf16>
    %cst_35 = arith.constant dense<0.000000e+00> : vector<32x128xf32>
    %40 = tpu.matmul %37, %39, %cst_35 {dimension_numbers = #tpu.dot_dimension_numbers<[1], [0], [0], [1], [0, 0, 1, 1], [], []>} : vector<32x256xbf16>, vector<256x128xbf16>, vector<32x128xf32> -> vector<32x128xf32>
    %41 = arith.addf %35, %40 : vector<32x128xf32>
    %42 = vector.extract_strided_slice %34 {offsets = [0, 128], sizes = [32, 128], strides = [1, 1]} : vector<32x256xf32> to vector<32x128xf32>
    %c0_36 = arith.constant 0 : index
    %c9 = arith.constant 9 : index
    %c0_37 = arith.constant 0 : index
    %43 = vector.load %arg16[%c0_36, %c9, %c0_37] : memref<2x25x512xbf16, #tpu.memory_space<vmem>>, vector<2x16x256xbf16>
    %44 = vector.shape_cast %43 : vector<2x16x256xbf16> to vector<32x256xbf16>
    %c1 = arith.constant 1 : index
    %c0_38 = arith.constant 0 : index
    %c0_39 = arith.constant 0 : index
    %45 = vector.load %arg4[%c1, %c0_38, %c0_39] : memref<2x256x128xbf16, #tpu.memory_space<vmem>>, vector<1x256x128xbf16>
    %46 = vector.shape_cast %45 : vector<1x256x128xbf16> to vector<256x128xbf16>
    %cst_40 = arith.constant dense<0.000000e+00> : vector<32x128xf32>
    %47 = tpu.matmul %44, %46, %cst_40 {dimension_numbers = #tpu.dot_dimension_numbers<[1], [0], [0], [1], [0, 0, 1, 1], [], []>} : vector<32x256xbf16>, vector<256x128xbf16>, vector<32x128xf32> -> vector<32x128xf32>
    %48 = arith.addf %42, %47 : vector<32x128xf32>
    %49 = vector.shape_cast %41 : vector<32x128xf32> to vector<2x16x128xf32>
    %c0_41 = arith.constant 0 : index
    %c0_42 = arith.constant 0 : index
    %50 = vector.load %arg7[%c0_41, %c0_42] : memref<16x128xf32, #tpu.memory_space<vmem>>, vector<16x128xf32>
    %51 = vector.shape_cast %50 : vector<16x128xf32> to vector<1x16x128xf32>
    %52 = vector.broadcast %51 : vector<1x16x128xf32> to vector<2x16x128xf32>
    %53 = arith.addf %49, %52 : vector<2x16x128xf32>
    %54 = vector.shape_cast %53 : vector<2x16x128xf32> to vector<32x128xf32>
    %55 = vector.shape_cast %48 : vector<32x128xf32> to vector<2x16x128xf32>
    %c0_43 = arith.constant 0 : index
    %c0_44 = arith.constant 0 : index
    %56 = vector.load %arg8[%c0_43, %c0_44] : memref<16x128xf32, #tpu.memory_space<vmem>>, vector<16x128xf32>
    %57 = vector.shape_cast %56 : vector<16x128xf32> to vector<1x16x128xf32>
    %58 = vector.broadcast %57 : vector<1x16x128xf32> to vector<2x16x128xf32>
    %59 = arith.addf %55, %58 : vector<2x16x128xf32>
    %60 = vector.shape_cast %59 : vector<2x16x128xf32> to vector<32x128xf32>
    %cst_45 = arith.constant 0.000000e+00 : f32
    %61 = vector.broadcast %cst_45 : f32 to vector<32x128xf32>
    %62 = arith.cmpf oge, %54, %61 : vector<32x128xf32>
    %cst_46 = arith.constant 0.00999999977 : f32
    %63 = vector.broadcast %cst_46 : f32 to vector<32x128xf32>
    %64 = arith.mulf %63, %54 : vector<32x128xf32>
    %65 = arith.select %62, %54, %64 : vector<32x128xi1>, vector<32x128xf32>
    %cst_47 = arith.constant 0.000000e+00 : f32
    %66 = vector.broadcast %cst_47 : f32 to vector<32x128xf32>
    %67 = arith.cmpf oge, %60, %66 : vector<32x128xf32>
    %cst_48 = arith.constant 0.00999999977 : f32
    %68 = vector.broadcast %cst_48 : f32 to vector<32x128xf32>
    %69 = arith.mulf %68, %60 : vector<32x128xf32>
    %70 = arith.select %67, %60, %69 : vector<32x128xi1>, vector<32x128xf32>
    %c0_49 = arith.constant 0 : index
    %c0_50 = arith.constant 0 : index
    %71 = vector.load %arg10[%c0_49, %c0_50] : memref<1x128xf32, #tpu.memory_space<vmem>>, vector<1x128xf32>
    %c0_51 = arith.constant 0 : index
    %c0_52 = arith.constant 0 : index
    %72 = vector.load %arg11[%c0_51, %c0_52] : memref<1x128xf32, #tpu.memory_space<vmem>>, vector<1x128xf32>
    %cst_53 = arith.constant dense<0.000000e+00> : vector<128xf32>
    %73 = vector.multi_reduction <add>, %65, %cst_53 [0] : vector<32x128xf32> to vector<128xf32>
    %74 = vector.shape_cast %73 : vector<128xf32> to vector<1x128xf32>
    %cst_54 = arith.constant dense<0.000000e+00> : vector<128xf32>
    %75 = vector.multi_reduction <add>, %70, %cst_54 [0] : vector<32x128xf32> to vector<128xf32>
    %76 = vector.shape_cast %75 : vector<128xf32> to vector<1x128xf32>
    %77 = arith.addf %74, %76 : vector<1x128xf32>
    %cst_55 = arith.constant dense<0.000000e+00> : vector<1x128xf32>
    %78 = tpu.matmul %77, %30, %cst_55 {dimension_numbers = #tpu.dot_dimension_numbers<[1], [0], [0], [1], [0, 0, 1, 1], [], []>} : vector<1x128xf32>, vector<128x128xf32>, vector<1x128xf32> -> vector<1x128xf32>
    %79 = vector.broadcast %78 : vector<1x128xf32> to vector<32x128xf32>
    %80 = arith.subf %65, %79 : vector<32x128xf32>
    %81 = vector.broadcast %78 : vector<1x128xf32> to vector<32x128xf32>
    %82 = arith.subf %70, %81 : vector<32x128xf32>
    %83 = arith.mulf %80, %80 : vector<32x128xf32>
    %cst_56 = arith.constant dense<0.000000e+00> : vector<128xf32>
    %84 = vector.multi_reduction <add>, %83, %cst_56 [0] : vector<32x128xf32> to vector<128xf32>
    %85 = vector.shape_cast %84 : vector<128xf32> to vector<1x128xf32>
    %86 = arith.mulf %82, %82 : vector<32x128xf32>
    %cst_57 = arith.constant dense<0.000000e+00> : vector<128xf32>
    %87 = vector.multi_reduction <add>, %86, %cst_57 [0] : vector<32x128xf32> to vector<128xf32>
    %88 = vector.shape_cast %87 : vector<128xf32> to vector<1x128xf32>
    %89 = arith.addf %85, %88 : vector<1x128xf32>
    %cst_58 = arith.constant dense<0.000000e+00> : vector<1x128xf32>
    %90 = tpu.matmul %89, %30, %cst_58 {dimension_numbers = #tpu.dot_dimension_numbers<[1], [0], [0], [1], [0, 0, 1, 1], [], []>} : vector<1x128xf32>, vector<128x128xf32>, vector<1x128xf32> -> vector<1x128xf32>
    %cst_59 = arith.constant 9.99999974E-6 : f32
    %91 = vector.broadcast %cst_59 : f32 to vector<1x128xf32>
    %92 = arith.addf %90, %91 : vector<1x128xf32>
    %93 = math.rsqrt %92 : vector<1x128xf32>
    %94 = arith.mulf %93, %71 : vector<1x128xf32>
    %95 = vector.broadcast %94 : vector<1x128xf32> to vector<32x128xf32>
    %96 = arith.mulf %80, %95 : vector<32x128xf32>
    %97 = vector.broadcast %72 : vector<1x128xf32> to vector<32x128xf32>
    %98 = arith.addf %96, %97 : vector<32x128xf32>
    %99 = vector.broadcast %94 : vector<1x128xf32> to vector<32x128xf32>
    %100 = arith.mulf %82, %99 : vector<32x128xf32>
    %101 = vector.broadcast %72 : vector<1x128xf32> to vector<32x128xf32>
    %102 = arith.addf %100, %101 : vector<32x128xf32>
    %cst_60 = arith.constant 0.000000e+00 : bf16
    %103 = vector.broadcast %cst_60 : bf16 to vector<2x1x256xbf16>
    %c0_61 = arith.constant 0 : index
    %c7_62 = arith.constant 7 : index
    %c0_63 = arith.constant 0 : index
    %104 = vector.load %arg17[%c0_61, %c7_62, %c0_63] : memref<2x25x256xbf16, #tpu.memory_space<vmem>>, vector<2x1x256xbf16>
    tpu.vector_store %arg17[%c0_61, %c7_62, %c0_63], %103 {strides = array<i32>} : memref<2x25x256xbf16, #tpu.memory_space<vmem>>, vector<2x1x256xbf16>,
    %c0_64 = arith.constant 0 : index
    %c24_65 = arith.constant 24 : index
    %c0_66 = arith.constant 0 : index
    %105 = vector.load %arg17[%c0_64, %c24_65, %c0_66] : memref<2x25x256xbf16, #tpu.memory_space<vmem>>, vector<2x1x256xbf16>
    tpu.vector_store %arg17[%c0_64, %c24_65, %c0_66], %103 {strides = array<i32>} : memref<2x25x256xbf16, #tpu.memory_space<vmem>>, vector<2x1x256xbf16>,
    %106 = arith.truncf %98 : vector<32x128xf32> to vector<32x128xbf16>
    %107 = vector.shape_cast %106 : vector<32x128xbf16> to vector<2x16x128xbf16>
    %c0_67 = arith.constant 0 : index
    %c8_68 = arith.constant 8 : index
    %c0_69 = arith.constant 0 : index
    %108 = vector.load %arg17[%c0_67, %c8_68, %c0_69] : memref<2x25x256xbf16, #tpu.memory_space<vmem>>, vector<2x16x128xbf16>
    tpu.vector_store %arg17[%c0_67, %c8_68, %c0_69], %107 {strides = array<i32>} : memref<2x25x256xbf16, #tpu.memory_space<vmem>>, vector<2x16x128xbf16>,
    %109 = arith.truncf %102 : vector<32x128xf32> to vector<32x128xbf16>
    %110 = vector.shape_cast %109 : vector<32x128xbf16> to vector<2x16x128xbf16>
    %c0_70 = arith.constant 0 : index
    %c8_71 = arith.constant 8 : index
    %c128_72 = arith.constant 128 : index
    %111 = vector.load %arg17[%c0_70, %c8_71, %c128_72] : memref<2x25x256xbf16, #tpu.memory_space<vmem>>, vector<2x16x128xbf16>
    tpu.vector_store %arg17[%c0_70, %c8_71, %c128_72], %110 {strides = array<i32>} : memref<2x25x256xbf16, #tpu.memory_space<vmem>>, vector<2x16x128xbf16>,
    %c0_73 = arith.constant 0 : index
    %c8_74 = arith.constant 8 : index
    %c0_75 = arith.constant 0 : index
    %112 = vector.load %arg17[%c0_73, %c8_74, %c0_75] : memref<2x25x256xbf16, #tpu.memory_space<vmem>>, vector<2x16x256xbf16>
    %113 = vector.shape_cast %112 : vector<2x16x256xbf16> to vector<32x256xbf16>
    %c0_76 = arith.constant 0 : index
    %c0_77 = arith.constant 0 : index
    %114 = vector.load %arg5[%c0_76, %c0_77] : memref<256x256xbf16, #tpu.memory_space<vmem>>, vector<256x256xbf16>
    %cst_78 = arith.constant dense<0.000000e+00> : vector<32x256xf32>
    %115 = tpu.matmul %113, %114, %cst_78 {dimension_numbers = #tpu.dot_dimension_numbers<[1], [0], [0], [1], [0, 0, 1, 1], [], []>} : vector<32x256xbf16>, vector<256x256xbf16>, vector<32x256xf32> -> vector<32x256xf32>
    %116 = vector.extract_strided_slice %115 {offsets = [0, 0], sizes = [32, 128], strides = [1, 1]} : vector<32x256xf32> to vector<32x128xf32>
    %c0_79 = arith.constant 0 : index
    %c7_80 = arith.constant 7 : index
    %c128_81 = arith.constant 128 : index
    %117 = vector.load %arg17[%c0_79, %c7_80, %c128_81] : memref<2x25x256xbf16, #tpu.memory_space<vmem>>, vector<2x16x128xbf16>
    %118 = vector.shape_cast %117 : vector<2x16x128xbf16> to vector<32x128xbf16>
    %c0_82 = arith.constant 0 : index
    %c0_83 = arith.constant 0 : index
    %c0_84 = arith.constant 0 : index
    %119 = vector.load %arg6[%c0_82, %c0_83, %c0_84] : memref<2x128x128xbf16, #tpu.memory_space<vmem>>, vector<1x128x128xbf16>
    %120 = vector.shape_cast %119 : vector<1x128x128xbf16> to vector<128x128xbf16>
    %cst_85 = arith.constant dense<0.000000e+00> : vector<32x128xf32>
    %121 = tpu.matmul %118, %120, %cst_85 {dimension_numbers = #tpu.dot_dimension_numbers<[1], [0], [0], [1], [0, 0, 1, 1], [], []>} : vector<32x128xbf16>, vector<128x128xbf16>, vector<32x128xf32> -> vector<32x128xf32>
    %122 = arith.addf %116, %121 : vector<32x128xf32>
    %c0_86 = arith.constant 0 : index
    %c0_87 = arith.constant 0 : index
    %123 = vector.load %arg9[%c0_86, %c0_87] : memref<1x128xf32, #tpu.memory_space<vmem>>, vector<1x128xf32>
    %124 = vector.broadcast %123 : vector<1x128xf32> to vector<32x128xf32>
    %125 = arith.addf %122, %124 : vector<32x128xf32>
    %126 = vector.extract_strided_slice %115 {offsets = [0, 128], sizes = [32, 128], strides = [1, 1]} : vector<32x256xf32> to vector<32x128xf32>
    %c0_88 = arith.constant 0 : index
    %c9_89 = arith.constant 9 : index
    %c0_90 = arith.constant 0 : index
    %127 = vector.load %arg17[%c0_88, %c9_89, %c0_90] : memref<2x25x256xbf16, #tpu.memory_space<vmem>>, vector<2x16x128xbf16>
    %128 = vector.shape_cast %127 : vector<2x16x128xbf16> to vector<32x128xbf16>
    %c1_91 = arith.constant 1 : index
    %c0_92 = arith.constant 0 : index
    %c0_93 = arith.constant 0 : index
    %129 = vector.load %arg6[%c1_91, %c0_92, %c0_93] : memref<2x128x128xbf16, #tpu.memory_space<vmem>>, vector<1x128x128xbf16>
    %130 = vector.shape_cast %129 : vector<1x128x128xbf16> to vector<128x128xbf16>
    %cst_94 = arith.constant dense<0.000000e+00> : vector<32x128xf32>
    %131 = tpu.matmul %128, %130, %cst_94 {dimension_numbers = #tpu.dot_dimension_numbers<[1], [0], [0], [1], [0, 0, 1, 1], [], []>} : vector<32x128xbf16>, vector<128x128xbf16>, vector<32x128xf32> -> vector<32x128xf32>
    %132 = arith.addf %126, %131 : vector<32x128xf32>
    %c0_95 = arith.constant 0 : index
    %c0_96 = arith.constant 0 : index
    %133 = vector.load %arg9[%c0_95, %c0_96] : memref<1x128xf32, #tpu.memory_space<vmem>>, vector<1x128xf32>
    %134 = vector.broadcast %133 : vector<1x128xf32> to vector<32x128xf32>
    %135 = arith.addf %132, %134 : vector<32x128xf32>
    %cst_97 = arith.constant 0.000000e+00 : f32
    %136 = vector.broadcast %cst_97 : f32 to vector<32x128xf32>
    %137 = arith.cmpf oge, %125, %136 : vector<32x128xf32>
    %cst_98 = arith.constant 0.00999999977 : f32
    %138 = vector.broadcast %cst_98 : f32 to vector<32x128xf32>
    %139 = arith.mulf %138, %125 : vector<32x128xf32>
    %140 = arith.select %137, %125, %139 : vector<32x128xi1>, vector<32x128xf32>
    %cst_99 = arith.constant 0.000000e+00 : f32
    %141 = vector.broadcast %cst_99 : f32 to vector<32x128xf32>
    %142 = arith.cmpf oge, %135, %141 : vector<32x128xf32>
    %cst_100 = arith.constant 0.00999999977 : f32
    %143 = vector.broadcast %cst_100 : f32 to vector<32x128xf32>
    %144 = arith.mulf %143, %135 : vector<32x128xf32>
    %145 = arith.select %142, %135, %144 : vector<32x128xi1>, vector<32x128xf32>
    %c0_101 = arith.constant 0 : index
    %c0_102 = arith.constant 0 : index
    %146 = vector.load %arg12[%c0_101, %c0_102] : memref<1x128xf32, #tpu.memory_space<vmem>>, vector<1x128xf32>
    %c0_103 = arith.constant 0 : index
    %c0_104 = arith.constant 0 : index
    %147 = vector.load %arg13[%c0_103, %c0_104] : memref<1x128xf32, #tpu.memory_space<vmem>>, vector<1x128xf32>
    %cst_105 = arith.constant dense<0.000000e+00> : vector<128xf32>
    %148 = vector.multi_reduction <add>, %140, %cst_105 [0] : vector<32x128xf32> to vector<128xf32>
    %149 = vector.shape_cast %148 : vector<128xf32> to vector<1x128xf32>
    %cst_106 = arith.constant dense<0.000000e+00> : vector<128xf32>
    %150 = vector.multi_reduction <add>, %145, %cst_106 [0] : vector<32x128xf32> to vector<128xf32>
    %151 = vector.shape_cast %150 : vector<128xf32> to vector<1x128xf32>
    %152 = arith.addf %149, %151 : vector<1x128xf32>
    %cst_107 = arith.constant dense<0.000000e+00> : vector<1x128xf32>
    %153 = tpu.matmul %152, %30, %cst_107 {dimension_numbers = #tpu.dot_dimension_numbers<[1], [0], [0], [1], [0, 0, 1, 1], [], []>} : vector<1x128xf32>, vector<128x128xf32>, vector<1x128xf32> -> vector<1x128xf32>
    %154 = vector.broadcast %153 : vector<1x128xf32> to vector<32x128xf32>
    %155 = arith.subf %140, %154 : vector<32x128xf32>
    %156 = vector.broadcast %153 : vector<1x128xf32> to vector<32x128xf32>
    %157 = arith.subf %145, %156 : vector<32x128xf32>
    %158 = arith.mulf %155, %155 : vector<32x128xf32>
    %cst_108 = arith.constant dense<0.000000e+00> : vector<128xf32>
    %159 = vector.multi_reduction <add>, %158, %cst_108 [0] : vector<32x128xf32> to vector<128xf32>
    %160 = vector.shape_cast %159 : vector<128xf32> to vector<1x128xf32>
    %161 = arith.mulf %157, %157 : vector<32x128xf32>
    %cst_109 = arith.constant dense<0.000000e+00> : vector<128xf32>
    %162 = vector.multi_reduction <add>, %161, %cst_109 [0] : vector<32x128xf32> to vector<128xf32>
    %163 = vector.shape_cast %162 : vector<128xf32> to vector<1x128xf32>
    %164 = arith.addf %160, %163 : vector<1x128xf32>
    %cst_110 = arith.constant dense<0.000000e+00> : vector<1x128xf32>
    %165 = tpu.matmul %164, %30, %cst_110 {dimension_numbers = #tpu.dot_dimension_numbers<[1], [0], [0], [1], [0, 0, 1, 1], [], []>} : vector<1x128xf32>, vector<128x128xf32>, vector<1x128xf32> -> vector<1x128xf32>
    %cst_111 = arith.constant 9.99999974E-6 : f32
    %166 = vector.broadcast %cst_111 : f32 to vector<1x128xf32>
    %167 = arith.addf %165, %166 : vector<1x128xf32>
    %168 = math.rsqrt %167 : vector<1x128xf32>
    %169 = arith.mulf %168, %146 : vector<1x128xf32>
    %170 = vector.broadcast %169 : vector<1x128xf32> to vector<32x128xf32>
    %171 = arith.mulf %155, %170 : vector<32x128xf32>
    %172 = vector.broadcast %147 : vector<1x128xf32> to vector<32x128xf32>
    %173 = arith.addf %171, %172 : vector<32x128xf32>
    %174 = vector.broadcast %169 : vector<1x128xf32> to vector<32x128xf32>
    %175 = arith.mulf %157, %174 : vector<32x128xf32>
    %176 = vector.broadcast %147 : vector<1x128xf32> to vector<32x128xf32>
    %177 = arith.addf %175, %176 : vector<32x128xf32>
    %c0_112 = arith.constant 0 : index
    %c0_113 = arith.constant 0 : index
    %178 = vector.load %arg15[%c0_112, %c0_113] : memref<32x256xf32, #tpu.memory_space<vmem>>, vector<32x128xf32>
    tpu.vector_store %arg15[%c0_112, %c0_113], %173 {strides = array<i32>} : memref<32x256xf32, #tpu.memory_space<vmem>>, vector<32x128xf32>,
    %c0_114 = arith.constant 0 : index
    %c128_115 = arith.constant 128 : index
    %179 = vector.load %arg15[%c0_114, %c128_115] : memref<32x256xf32, #tpu.memory_space<vmem>>, vector<32x128xf32>
    tpu.vector_store %arg15[%c0_114, %c128_115], %177 {strides = array<i32>} : memref<32x256xf32, #tpu.memory_space<vmem>>, vector<32x128xf32>,
    return
  }
  func.func @transform_0(%arg0: i32) -> (i32, i32, i32) {
    %c0_i32 = arith.constant 0 : i32
    %c0_i32_0 = arith.constant 0 : i32
    %c0_i32_1 = arith.constant 0 : i32
    %c0_i32_2 = arith.constant 0 : i32
    return %c0_i32, %c0_i32_0, %c0_i32_1 : i32, i32, i32
  }
  func.func @transform_1(%arg0: i32) -> (i32, i32, i32) {
    %c0_i32 = arith.constant 0 : i32
    %c0_i32_0 = arith.constant 0 : i32
    %c0_i32_1 = arith.constant 0 : i32
    %c0_i32_2 = arith.constant 0 : i32
    return %c0_i32, %c0_i32_0, %c0_i32_1 : i32, i32, i32
  }
  func.func @transform_2(%arg0: i32) -> (i32, i32) {
    %c0_i32 = arith.constant 0 : i32
    %c0_i32_0 = arith.constant 0 : i32
    %c0_i32_1 = arith.constant 0 : i32
    return %c0_i32, %c0_i32_0 : i32, i32
  }
  func.func @transform_3(%arg0: i32) -> (i32, i32, i32) {
    %c0_i32 = arith.constant 0 : i32
    %c0_i32_0 = arith.constant 0 : i32
    %c0_i32_1 = arith.constant 0 : i32
    %c0_i32_2 = arith.constant 0 : i32
    return %c0_i32, %c0_i32_0, %c0_i32_1 : i32, i32, i32
  }
  func.func @transform_4(%arg0: i32) -> (i32, i32) {
    %c0_i32 = arith.constant 0 : i32
    %c0_i32_0 = arith.constant 0 : i32
    %c0_i32_1 = arith.constant 0 : i32
    return %c0_i32, %c0_i32_0 : i32, i32
  }
  func.func @transform_5(%arg0: i32) -> (i32, i32, i32) {
    %c0_i32 = arith.constant 0 : i32
    %c0_i32_0 = arith.constant 0 : i32
    %c0_i32_1 = arith.constant 0 : i32
    %c0_i32_2 = arith.constant 0 : i32
    return %c0_i32, %c0_i32_0, %c0_i32_1 : i32, i32, i32
  }
  func.func @transform_6(%arg0: i32) -> (i32, i32) {
    %c0_i32 = arith.constant 0 : i32
    %c0_i32_0 = arith.constant 0 : i32
    %c0_i32_1 = arith.constant 0 : i32
    return %c0_i32, %c0_i32_0 : i32, i32
  }
  func.func @transform_7(%arg0: i32) -> (i32, i32) {
    %c0_i32 = arith.constant 0 : i32
    %c0_i32_0 = arith.constant 0 : i32
    %c0_i32_1 = arith.constant 0 : i32
    return %c0_i32, %c0_i32_0 : i32, i32
  }
  func.func @transform_8(%arg0: i32) -> (i32, i32) {
    %c0_i32 = arith.constant 0 : i32
    %c0_i32_0 = arith.constant 0 : i32
    %c0_i32_1 = arith.constant 0 : i32
    return %c0_i32, %c0_i32_0 : i32, i32
  }
  func.func @transform_9(%arg0: i32) -> (i32, i32) {
    %c0_i32 = arith.constant 0 : i32
    %c0_i32_0 = arith.constant 0 : i32
    %c0_i32_1 = arith.constant 0 : i32
    return %c0_i32, %c0_i32_0 : i32, i32
  }
  func.func @transform_10(%arg0: i32) -> (i32, i32) {
    %c0_i32 = arith.constant 0 : i32
    %c0_i32_0 = arith.constant 0 : i32
    %c0_i32_1 = arith.constant 0 : i32
    return %c0_i32, %c0_i32_0 : i32, i32
  }
  func.func @transform_11(%arg0: i32) -> (i32, i32) {
    %c0_i32 = arith.constant 0 : i32
    %c0_i32_0 = arith.constant 0 : i32
    %c0_i32_1 = arith.constant 0 : i32
    return %c0_i32, %c0_i32_0 : i32, i32
  }
  func.func @transform_12(%arg0: i32) -> (i32, i32) {
    %c0_i32 = arith.constant 0 : i32
    %c0_i32_0 = arith.constant 0 : i32
    %c0_i32_1 = arith.constant 0 : i32
    return %c0_i32, %c0_i32_0 : i32, i32
  }
  func.func @transform_13(%arg0: i32) -> (i32, i32) {
    %c0_i32 = arith.constant 0 : i32
    %c0_i32_0 = arith.constant 0 : i32
    %c0_i32_1 = arith.constant 0 : i32
    return %c0_i32, %c0_i32_0 : i32, i32
  }
  func.func @transform_14(%arg0: i32) -> (i32, i32) {
    %c0_i32 = arith.constant 0 : i32
    %c0_i32_0 = arith.constant 0 : i32
    %c0_i32_1 = arith.constant 0 : i32
    return %c0_i32, %c0_i32_0 : i32, i32
  }
}

</mosaic_0001>

<llo_original>
// kernel: up_conv_block.1
$region0: #{up_conv_block.1}
  #allocation0 [shape = 'u32[]', space=smem, size = 0x4, offset = 0x4, fixed_abs, tag = 'smem constant byte address 0x4 - core index']
  #allocation1 [shape = 'u32[144,128]{1,0:T(1,128)}', space=vmem, size = 0x12000, scoped, tag = 'internal scratch']
  #allocation2 [shape = 'bf16[2,25,512]{2,1,0:T(8,128)(2,1)}', space=vmem, size = 0x10000, scoped, tag = 'scratch operand']
  #allocation3 [shape = 'bf16[2,25,256]{2,1,0:T(8,128)(2,1)}', space=vmem, size = 0x8000, scoped, tag = 'scratch operand']
  %s0 = inlined_call_operand.hbm [shape: f32[2,16,128], index: 0, kind: input, shape index: {}]
  %s1 = inlined_call_operand.hbm [shape: f32[2,16,256], index: 1, kind: input, shape index: {}]
  %s2 = inlined_call_operand.hbm [shape: bf16[512,256], index: 2, kind: input, shape index: {}]
  %s3 = inlined_call_operand.hbm [shape: bf16[2,256,128], index: 3, kind: input, shape index: {}]
  %s4 = inlined_call_operand.hbm [shape: bf16[256,256], index: 4, kind: input, shape index: {}]
  %s5 = inlined_call_operand.hbm [shape: bf16[2,128,128], index: 5, kind: input, shape index: {}]
  %s6 = inlined_call_operand.hbm [shape: f32[16,128], index: 6, kind: input, shape index: {}]
  %s7 = inlined_call_operand.hbm [shape: f32[16,128], index: 7, kind: input, shape index: {}]
  %s8 = inlined_call_operand.vmem [shape: f32[1,128], index: 8, kind: input, shape index: {}]
  %s9 = inlined_call_operand.vmem [shape: f32[1,128], index: 9, kind: input, shape index: {}]
  %s10 = inlined_call_operand.vmem [shape: f32[1,128], index: 10, kind: input, shape index: {}]
  %s11 = inlined_call_operand.vmem [shape: f32[1,128], index: 11, kind: input, shape index: {}]
  %s12 = inlined_call_operand.vmem [shape: f32[1,128], index: 12, kind: input, shape index: {}]
  %s13 = inlined_call_operand.hbm [shape: f32[128,128], index: 13, kind: input, shape index: {}]
  %s14 = inlined_call_operand.hbm [shape: f32[32,256], index: 14, kind: output, shape index: {}]
  %s15 = sld [smem:[#allocation0]]
  $region102: #{up_conv_block.1} parent=0
    _
  %s17 = ssub.s32 1, %s15
  %s18 = scalar_select 0, %s17, %s15
  $region1: #{up_conv_block.1} parent=0
    #allocation4 [shape = 'u8[16384]{0}', space=vmem, size = 0x4000, scoped, tag = 'input window, operand 0, single buffered']
    #allocation5 [shape = 's32[1]{0}', space=sflag, size = 0x4, scoped, tag = 'scoped memory for up_conv_block.1']
    #allocation6 [shape = 's32[1]{0}', space=sflag, size = 0x4, scoped, tag = 'scoped memory for up_conv_block.1']
    #allocation7 [shape = 'u8[32768]{0}', space=vmem, size = 0x8000, scoped, tag = 'input window, operand 1, single buffered']
    #allocation8 [shape = 's32[1]{0}', space=sflag, size = 0x4, scoped, tag = 'scoped memory for up_conv_block.1']
    #allocation9 [shape = 'u8[262144]{0}', space=vmem, size = 0x40000, scoped, tag = 'input window, operand 2, single buffered']
    #allocation10 [shape = 'u8[131072]{0}', space=vmem, size = 0x20000, scoped, tag = 'input window, operand 3, single buffered']
    #allocation11 [shape = 's32[1]{0}', space=sflag, size = 0x4, scoped, tag = 'scoped memory for up_conv_block.1']
    #allocation12 [shape = 'u8[131072]{0}', space=vmem, size = 0x20000, scoped, tag = 'input window, operand 4, single buffered']
    #allocation13 [shape = 'u8[65536]{0}', space=vmem, size = 0x10000, scoped, tag = 'input window, operand 5, single buffered']
    #allocation14 [shape = 's32[1]{0}', space=sflag, size = 0x4, scoped, tag = 'scoped memory for up_conv_block.1']
    #allocation15 [shape = 'u8[8192]{0}', space=vmem, size = 0x2000, scoped, tag = 'input window, operand 6, single buffered']
    #allocation16 [shape = 'u8[8192]{0}', space=vmem, size = 0x2000, scoped, tag = 'input window, operand 7, single buffered']
    #allocation17 [shape = 's32[1]{0}', space=sflag, size = 0x4, scoped, tag = 'scoped memory for up_conv_block.1']
    #allocation18 [shape = 'u8[65536]{0}', space=vmem, size = 0x10000, scoped, tag = 'input window, operand 13, single buffered']
    #allocation19 [shape = 'u8[32768]{0}', space=vmem, size = 0x8000, scoped, tag = 'output window, operand 0, single buffered']
    %19 = vsyncpa [#allocation5], 0
    %20 = vsyncpa [#allocation8], 0
    %21 = vsyncpa [#allocation11], 0
    %22 = vsyncpa [#allocation14], 0
    %23 = vsyncpa [#allocation17], 0
    %24 = vsyncpa [#allocation6], 0
    // Predicated region
    $region2: #{up_conv_block.1} parent=1 // pred_check
      _
    $region3: #{up_conv_block.1} parent=1 // pred_check_branch
      %26 = sbr.rel (0) target = $region5
    $region4: #{up_conv_block.1} parent=1 // pred_region
      %s28 = ssub.s32 512, 512
      %29 = vsyncadd [#allocation5], %s28
      %s30 = sshll.u32 [#allocation4], 4
      %s31 = int_to_ptr.vmem [resolvable:$true] %s30
      %36 = dma.hbm_to_vmem [thread:$0]  %s0, 512, %s31, [#allocation5], 128, 128, 8
    $region5: #{up_conv_block.1} parent=1 // pred_fallthru
      _
    // Predicated region
    $region6: #{up_conv_block.1} parent=1 // pred_check
      _
    $region7: #{up_conv_block.1} parent=1 // pred_check_branch
      %38 = sbr.rel (0) target = $region9
    $region8: #{up_conv_block.1} parent=1 // pred_region
      %s40 = ssub.s32 1024, 1024
      %41 = vsyncadd [#allocation8], %s40
      %s42 = sshll.u32 [#allocation7], 4
      %s43 = int_to_ptr.vmem [resolvable:$true] %s42
      %48 = dma.hbm_to_vmem [thread:$0]  %s1, 1024, %s43, [#allocation8], 256, 256, 16
    $region9: #{up_conv_block.1} parent=1 // pred_fallthru
      _
    // Predicated region
    $region10: #{up_conv_block.1} parent=1 // pred_check
      _
    $region11: #{up_conv_block.1} parent=1 // pred_check_branch
      %50 = sbr.rel (0) target = $region13
    $region12: #{up_conv_block.1} parent=1 // pred_region
      %s52 = ssub.s32 8192, 8192
      %53 = vsyncadd [#allocation8], %s52
      %s54 = sshll.u32 [#allocation9], 4
      %s55 = int_to_ptr.vmem [resolvable:$true] %s54
      %60 = dma.hbm_to_vmem [thread:$0]  %s2, 8192, %s55, [#allocation8], 128, 128, 8
    $region13: #{up_conv_block.1} parent=1 // pred_fallthru
      _
    // Predicated region
    $region14: #{up_conv_block.1} parent=1 // pred_check
      _
    $region15: #{up_conv_block.1} parent=1 // pred_check_branch
      %62 = sbr.rel (0) target = $region17
    $region16: #{up_conv_block.1} parent=1 // pred_region
      %s64 = ssub.s32 4096, 4096
      %65 = vsyncadd [#allocation11], %s64
      %s66 = sshll.u32 [#allocation10], 4
      %s67 = int_to_ptr.vmem [resolvable:$true] %s66
      %72 = dma.hbm_to_vmem [thread:$0]  %s3, 4096, %s67, [#allocation11], 64, 64, 4
    $region17: #{up_conv_block.1} parent=1 // pred_fallthru
      _
    // Predicated region
    $region18: #{up_conv_block.1} parent=1 // pred_check
      _
    $region19: #{up_conv_block.1} parent=1 // pred_check_branch
      %74 = sbr.rel (0) target = $region21
    $region20: #{up_conv_block.1} parent=1 // pred_region
      %s76 = ssub.s32 4096, 4096
      %77 = vsyncadd [#allocation11], %s76
      %s78 = sshll.u32 [#allocation12], 4
      %s79 = int_to_ptr.vmem [resolvable:$true] %s78
      %84 = dma.hbm_to_vmem [thread:$0]  %s4, 4096, %s79, [#allocation11], 128, 128, 8
    $region21: #{up_conv_block.1} parent=1 // pred_fallthru
      _
    // Predicated region
    $region22: #{up_conv_block.1} parent=1 // pred_check
      _
    $region23: #{up_conv_block.1} parent=1 // pred_check_branch
      %86 = sbr.rel (0) target = $region25
    $region24: #{up_conv_block.1} parent=1 // pred_region
      %s88 = ssub.s32 2048, 2048
      %89 = vsyncadd [#allocation14], %s88
      %s90 = sshll.u32 [#allocation13], 4
      %s91 = int_to_ptr.vmem [resolvable:$true] %s90
      %96 = dma.hbm_to_vmem [thread:$0]  %s5, 2048, %s91, [#allocation14], 64, 64, 4
    $region25: #{up_conv_block.1} parent=1 // pred_fallthru
      _
    // Predicated region
    $region26: #{up_conv_block.1} parent=1 // pred_check
      _
    $region27: #{up_conv_block.1} parent=1 // pred_check_branch
      %98 = sbr.rel (0) target = $region29
    $region28: #{up_conv_block.1} parent=1 // pred_region
      %s100 = ssub.s32 256, 256
      %101 = vsyncadd [#allocation14], %s100
      %s102 = sshll.u32 [#allocation15], 4
      %s103 = int_to_ptr.vmem [resolvable:$true] %s102
      %108 = dma.hbm_to_vmem [thread:$0]  %s6, 256, %s103, [#allocation14], 128, 128, 8
    $region29: #{up_conv_block.1} parent=1 // pred_fallthru
      _
    // Predicated region
    $region30: #{up_conv_block.1} parent=1 // pred_check
      _
    $region31: #{up_conv_block.1} parent=1 // pred_check_branch
      %110 = sbr.rel (0) target = $region33
    $region32: #{up_conv_block.1} parent=1 // pred_region
      %s112 = ssub.s32 256, 256
      %113 = vsyncadd [#allocation17], %s112
      %s114 = sshll.u32 [#allocation16], 4
      %s115 = int_to_ptr.vmem [resolvable:$true] %s114
      %120 = dma.hbm_to_vmem [thread:$0]  %s7, 256, %s115, [#allocation17], 128, 128, 8
    $region33: #{up_conv_block.1} parent=1 // pred_fallthru
      _
    // Predicated region
    $region34: #{up_conv_block.1} parent=1 // pred_check
      _
    $region35: #{up_conv_block.1} parent=1 // pred_check_branch
      %122 = sbr.rel (0) target = $region37
    $region36: #{up_conv_block.1} parent=1 // pred_region
      _
    $region37: #{up_conv_block.1} parent=1 // pred_fallthru
      _
    // Predicated region
    $region38: #{up_conv_block.1} parent=1 // pred_check
      _
    $region39: #{up_conv_block.1} parent=1 // pred_check_branch
      %124 = sbr.rel (0) target = $region41
    $region40: #{up_conv_block.1} parent=1 // pred_region
      _
    $region41: #{up_conv_block.1} parent=1 // pred_fallthru
      _
    // Predicated region
    $region42: #{up_conv_block.1} parent=1 // pred_check
      _
    $region43: #{up_conv_block.1} parent=1 // pred_check_branch
      %126 = sbr.rel (0) target = $region45
    $region44: #{up_conv_block.1} parent=1 // pred_region
      _
    $region45: #{up_conv_block.1} parent=1 // pred_fallthru
      _
    // Predicated region
    $region46: #{up_conv_block.1} parent=1 // pred_check
      _
    $region47: #{up_conv_block.1} parent=1 // pred_check_branch
      %128 = sbr.rel (0) target = $region49
    $region48: #{up_conv_block.1} parent=1 // pred_region
      _
    $region49: #{up_conv_block.1} parent=1 // pred_fallthru
      _
    // Predicated region
    $region50: #{up_conv_block.1} parent=1 // pred_check
      _
    $region51: #{up_conv_block.1} parent=1 // pred_check_branch
      %130 = sbr.rel (0) target = $region53
    $region52: #{up_conv_block.1} parent=1 // pred_region
      _
    $region53: #{up_conv_block.1} parent=1 // pred_fallthru
      _
    // Predicated region
    $region54: #{up_conv_block.1} parent=1 // pred_check
      _
    $region55: #{up_conv_block.1} parent=1 // pred_check_branch
      %132 = sbr.rel (0) target = $region57
    $region56: #{up_conv_block.1} parent=1 // pred_region
      %s134 = ssub.s32 2048, 2048
      %135 = vsyncadd [#allocation17], %s134
      %s136 = sshll.u32 [#allocation18], 4
      %s137 = int_to_ptr.vmem [resolvable:$true] %s136
      %142 = dma.hbm_to_vmem [thread:$0]  %s13, 2048, %s137, [#allocation17], 128, 128, 8
    $region57: #{up_conv_block.1} parent=1 // pred_fallthru
      _
    // Predicated region
    $region58: #{up_conv_block.1} parent=1 // pred_check
      _
    $region59: #{up_conv_block.1} parent=1 // pred_check_branch
      %144 = sbr.rel (0) target = $region61
    $region60: #{up_conv_block.1} parent=1 // pred_region
      %145 = dma.done [#allocation5], 512
    $region61: #{up_conv_block.1} parent=1 // pred_fallthru
      _
    // Predicated region
    $region62: #{up_conv_block.1} parent=1 // pred_check
      _
    $region63: #{up_conv_block.1} parent=1 // pred_check_branch
      %147 = sbr.rel (0) target = $region65
    $region64: #{up_conv_block.1} parent=1 // pred_region
      %148 = dma.done [#allocation8], 1024
    $region65: #{up_conv_block.1} parent=1 // pred_fallthru
      _
    // Predicated region
    $region66: #{up_conv_block.1} parent=1 // pred_check
      _
    $region67: #{up_conv_block.1} parent=1 // pred_check_branch
      %150 = sbr.rel (0) target = $region69
    $region68: #{up_conv_block.1} parent=1 // pred_region
      %151 = dma.done [#allocation8], 8192
    $region69: #{up_conv_block.1} parent=1 // pred_fallthru
      _
    // Predicated region
    $region70: #{up_conv_block.1} parent=1 // pred_check
      _
    $region71: #{up_conv_block.1} parent=1 // pred_check_branch
      %153 = sbr.rel (0) target = $region73
    $region72: #{up_conv_block.1} parent=1 // pred_region
      %154 = dma.done [#allocation11], 4096
    $region73: #{up_conv_block.1} parent=1 // pred_fallthru
      _
    // Predicated region
    $region74: #{up_conv_block.1} parent=1 // pred_check
      _
    $region75: #{up_conv_block.1} parent=1 // pred_check_branch
      %156 = sbr.rel (0) target = $region77
    $region76: #{up_conv_block.1} parent=1 // pred_region
      %157 = dma.done [#allocation11], 4096
    $region77: #{up_conv_block.1} parent=1 // pred_fallthru
      _
    // Predicated region
    $region78: #{up_conv_block.1} parent=1 // pred_check
      _
    $region79: #{up_conv_block.1} parent=1 // pred_check_branch
      %159 = sbr.rel (0) target = $region81
    $region80: #{up_conv_block.1} parent=1 // pred_region
      %160 = dma.done [#allocation14], 2048
    $region81: #{up_conv_block.1} parent=1 // pred_fallthru
      _
    // Predicated region
    $region82: #{up_conv_block.1} parent=1 // pred_check
      _
    $region83: #{up_conv_block.1} parent=1 // pred_check_branch
      %162 = sbr.rel (0) target = $region85
    $region84: #{up_conv_block.1} parent=1 // pred_region
      %163 = dma.done [#allocation14], 256
    $region85: #{up_conv_block.1} parent=1 // pred_fallthru
      _
    // Predicated region
    $region86: #{up_conv_block.1} parent=1 // pred_check
      _
    $region87: #{up_conv_block.1} parent=1 // pred_check_branch
      %165 = sbr.rel (0) target = $region89
    $region88: #{up_conv_block.1} parent=1 // pred_region
      %166 = dma.done [#allocation17], 256
    $region89: #{up_conv_block.1} parent=1 // pred_fallthru
      _
    // Predicated region
    $region90: #{up_conv_block.1} parent=1 // pred_check
      _
    $region91: #{up_conv_block.1} parent=1 // pred_check_branch
      %168 = sbr.rel (0) target = $region93
    $region92: #{up_conv_block.1} parent=1 // pred_region
      %169 = dma.done [#allocation17], 2048
    $region93: #{up_conv_block.1} parent=1 // pred_fallthru
      _
    %v171 = vld [vmem:[#allocation4] sm:$0xff]
    %v172 = vld [vmem:[#allocation4 + $0x8] sm:$0xff]
    %v173 = vld [vmem:[#allocation4 + $0x10] sm:$0xff]
    %v174 = vld [vmem:[#allocation4 + $0x18] sm:$0xff]
    %vm179 = vcmask 1040384
    %v180 = vrot.slane %v171, 7
    %v181 = vrot.slane %v172, 7
    %v182 = vsel %vm179, %v180, %v181
    %v183 = vrot.slane %v173, 7
    %v184 = vrot.slane %v174, 7
    %v185 = vsel %vm179, %v183, %v184
    %v190 = vsel %vm179, %v171, %v180
    %v191 = vsel %vm179, %v173, %v183
    %vm192 = vcmask 1046528
    %v193 = vrot.slane %v171, 1
    %v194 = vrot.slane %v172, 1
    %v195 = vsel %vm192, %v193, %v194
    %v196 = vrot.slane %v173, 1
    %v197 = vrot.slane %v174, 1
    %v198 = vsel %vm192, %v196, %v197
    %v203 = vsel %vm192, %v194, %v172
    %v204 = vsel %vm192, %v197, %v174
    %v205 = vmul.f32 %v171, 0.75
    %v206 = vmul.f32 %v172, 0.75
    %v207 = vmul.f32 %v173, 0.75
    %v208 = vmul.f32 %v174, 0.75
    %v209 = vmul.f32 %v190, 0.25
    %v210 = vmul.f32 %v182, 0.25
    %v211 = vmul.f32 %v191, 0.25
    %v212 = vmul.f32 %v185, 0.25
    %v213 = vadd.f32 %v205, %v209
    %v214 = vadd.f32 %v206, %v210
    %v215 = vadd.f32 %v207, %v211
    %v216 = vadd.f32 %v208, %v212
    %v217 = vpack.c.bf16 %v214, %v213
    %v218 = vpack.c.bf16 %v216, %v215
    %v219 = vmul.f32 %v195, 0.25
    %v220 = vmul.f32 %v203, 0.25
    %v221 = vmul.f32 %v198, 0.25
    %v222 = vmul.f32 %v204, 0.25
    %v223 = vadd.f32 %v205, %v219
    %v224 = vadd.f32 %v206, %v220
    %v225 = vadd.f32 %v207, %v221
    %v226 = vadd.f32 %v208, %v222
    %v227 = vpack.c.bf16 %v224, %v223
    %v228 = vpack.c.bf16 %v226, %v225
    %v229 = vld [vmem:[#allocation7] sm:$0xff]
    %v230 = vld [vmem:[#allocation7 + $0x8] sm:$0xff]
    %v231 = vld [vmem:[#allocation7 + $0x10] sm:$0xff]
    %v232 = vld [vmem:[#allocation7 + $0x18] sm:$0xff]
    %v233 = vld [vmem:[#allocation7 + $0x20] sm:$0xff]
    %v234 = vld [vmem:[#allocation7 + $0x28] sm:$0xff]
    %v235 = vld [vmem:[#allocation7 + $0x30] sm:$0xff]
    %v236 = vld [vmem:[#allocation7 + $0x38] sm:$0xff]
    %v237 = vpack.c.bf16 %v231, %v229
    %v238 = vpack.c.bf16 %v232, %v230
    %v239 = vpack.c.bf16 %v235, %v233
    %v240 = vpack.c.bf16 %v236, %v234
    %vm241 = vcmask 1043459
    %vm242 = vsmask.f32 7950
    %vm243 = vmand %vm241, %vm242
    %vm244 = vcmask 1047559
    %vm245 = vsmask.f32 7966
    %vm246 = vmand %vm244, %vm245
    %vm247 = vmor %vm246, %vm243
    %v248 = vld [vmem:[#allocation2] sm:$0x88]
    %v249 = vsel %vm247, 0, %v248
    %250 = vst [vmem:[#allocation2] sm:$0x88] %v249
    %v251 = vld [vmem:[#allocation2 + $0x8] sm:$0x88]
    %v252 = vsel %vm247, 0, %v251
    %253 = vst [vmem:[#allocation2 + $0x8] sm:$0x88] %v252
    %v254 = vld [vmem:[#allocation2 + $0x40] sm:$0x88]
    %v255 = vsel %vm247, 0, %v254
    %256 = vst [vmem:[#allocation2 + $0x40] sm:$0x88] %v255
    %v257 = vld [vmem:[#allocation2 + $0x48] sm:$0x88]
    %v258 = vsel %vm247, 0, %v257
    %259 = vst [vmem:[#allocation2 + $0x48] sm:$0x88] %v258
    %vm260 = vcmask 1040384
    %vm261 = vsmask.f32 256
    %vm262 = vmand %vm260, %vm261
    %vm263 = vcmask 1044484
    %vm264 = vsmask.f32 4352
    %vm265 = vmand %vm263, %vm264
    %vm266 = vmor %vm265, %vm262
    %v267 = vld [vmem:[#allocation2 + $0x30] sm:$0x11]
    %v268 = vsel %vm266, 0, %v267
    %269 = vst [vmem:[#allocation2 + $0x30] sm:$0x11] %v268
    %v270 = vld [vmem:[#allocation2 + $0x38] sm:$0x11]
    %v271 = vsel %vm266, 0, %v270
    %272 = vst [vmem:[#allocation2 + $0x38] sm:$0x11] %v271
    %v273 = vld [vmem:[#allocation2 + $0x70] sm:$0x11]
    %v274 = vsel %vm266, 0, %v273
    %275 = vst [vmem:[#allocation2 + $0x70] sm:$0x11] %v274
    %v276 = vld [vmem:[#allocation2 + $0x78] sm:$0x11]
    %v277 = vsel %vm266, 0, %v276
    %278 = vst [vmem:[#allocation2 + $0x78] sm:$0x11] %v277
    %v281 = vunpack.c.l.b16 %v217
    %v282 = vunpack.c.h.b16 %v217
    %v283 = vunpack.c.l.b16 %v218
    %v284 = vunpack.c.h.b16 %v218
    %v285 = vpack.c.b16 %v281, %v281
    %v286 = vpack.c.b16 %v282, %v282
    %v287 = vpack.c.b16 %v283, %v283
    %v288 = vpack.c.b16 %v284, %v284
    %293 = vst [vmem:[#allocation2 + $0x10] sm:$0xf] %v285
    %294 = vst [vmem:[#allocation2 + $0x20] sm:$0xf] %v286
    %295 = vst [vmem:[#allocation2 + $0x50] sm:$0xf] %v287
    %296 = vst [vmem:[#allocation2 + $0x60] sm:$0xf] %v288
    %v299 = vunpack.c.l.b16 %v237
    %v300 = vunpack.c.h.b16 %v237
    %v301 = vunpack.c.l.b16 %v239
    %v302 = vunpack.c.h.b16 %v239
    %v303 = vpack.c.b16 %v299, %v299
    %v304 = vpack.c.b16 %v300, %v300
    %v305 = vpack.c.b16 %v301, %v301
    %v306 = vpack.c.b16 %v302, %v302
    %311 = vst [vmem:[#allocation2 + $0x14] sm:$0xf] %v303
    %312 = vst [vmem:[#allocation2 + $0x24] sm:$0xf] %v304
    %313 = vst [vmem:[#allocation2 + $0x54] sm:$0xf] %v305
    %314 = vst [vmem:[#allocation2 + $0x64] sm:$0xf] %v306
    %v317 = vunpack.c.l.b16 %v227
    %v318 = vunpack.c.h.b16 %v227
    %v319 = vunpack.c.l.b16 %v228
    %v320 = vunpack.c.h.b16 %v228
    %v321 = vpack.c.b16 %v317, %v317
    %v322 = vpack.c.b16 %v318, %v318
    %v323 = vpack.c.b16 %v319, %v319
    %v324 = vpack.c.b16 %v320, %v320
    %329 = vst [vmem:[#allocation2 + $0x18] sm:$0xf] %v321
    %330 = vst [vmem:[#allocation2 + $0x28] sm:$0xf] %v322
    %331 = vst [vmem:[#allocation2 + $0x58] sm:$0xf] %v323
    %332 = vst [vmem:[#allocation2 + $0x68] sm:$0xf] %v324
    %v335 = vunpack.c.l.b16 %v238
    %v336 = vunpack.c.h.b16 %v238
    %v337 = vunpack.c.l.b16 %v240
    %v338 = vunpack.c.h.b16 %v240
    %v339 = vpack.c.b16 %v335, %v335
    %v340 = vpack.c.b16 %v336, %v336
    %v341 = vpack.c.b16 %v337, %v337
    %v342 = vpack.c.b16 %v338, %v338
    %347 = vst [vmem:[#allocation2 + $0x1c] sm:$0xf] %v339
    %348 = vst [vmem:[#allocation2 + $0x2c] sm:$0xf] %v340
    %349 = vst [vmem:[#allocation2 + $0x5c] sm:$0xf] %v341
    %350 = vst [vmem:[#allocation2 + $0x6c] sm:$0xf] %v342
    %v351 = vld [vmem:[#allocation18] sm:$0xff]
    %v352 = vld [vmem:[#allocation18 + $0x8] sm:$0xff]
    %v353 = vld [vmem:[#allocation18 + $0x10] sm:$0xff]
    %v354 = vld [vmem:[#allocation18 + $0x18] sm:$0xff]
    %v355 = vld [vmem:[#allocation18 + $0x20] sm:$0xff]
    %v356 = vld [vmem:[#allocation18 + $0x28] sm:$0xff]
    %v357 = vld [vmem:[#allocation18 + $0x30] sm:$0xff]
    %v358 = vld [vmem:[#allocation18 + $0x38] sm:$0xff]
    %v359 = vld [vmem:[#allocation18 + $0x40] sm:$0xff]
    %v360 = vld [vmem:[#allocation18 + $0x48] sm:$0xff]
    %v361 = vld [vmem:[#allocation18 + $0x50] sm:$0xff]
    %v362 = vld [vmem:[#allocation18 + $0x58] sm:$0xff]
    %v363 = vld [vmem:[#allocation18 + $0x60] sm:$0xff]
    %v364 = vld [vmem:[#allocation18 + $0x68] sm:$0xff]
    %v365 = vld [vmem:[#allocation18 + $0x70] sm:$0xff]
    %v366 = vld [vmem:[#allocation18 + $0x78] sm:$0xff]
    %v367 = vld [vmem:[#allocation2 + $0x10] sm:$0xff]
    %v368 = vld [vmem:[#allocation2 + $0x18] sm:$0xff]
    %v369 = vld [vmem:[#allocation2 + $0x20] sm:$0xff]
    %v370 = vld [vmem:[#allocation2 + $0x28] sm:$0xff]
    %v371 = vld [vmem:[#allocation2 + $0x50] sm:$0xff]
    %v372 = vld [vmem:[#allocation2 + $0x58] sm:$0xff]
    %v373 = vld [vmem:[#allocation2 + $0x60] sm:$0xff]
    %v374 = vld [vmem:[#allocation2 + $0x68] sm:$0xff]
    %v375 = vld [vmem:[#allocation9] sm:$0xff]
    %v376 = vld [vmem:[#allocation9 + $0x8] sm:$0xff]
    %v377 = vld [vmem:[#allocation9 + $0x10] sm:$0xff]
    %v378 = vld [vmem:[#allocation9 + $0x18] sm:$0xff]
    %v379 = vld [vmem:[#allocation9 + $0x20] sm:$0xff]
    %v380 = vld [vmem:[#allocation9 + $0x28] sm:$0xff]
    %v381 = vld [vmem:[#allocation9 + $0x30] sm:$0xff]
    %v382 = vld [vmem:[#allocation9 + $0x38] sm:$0xff]
    %v383 = vld [vmem:[#allocation9 + $0x40] sm:$0xff]
    %v384 = vld [vmem:[#allocation9 + $0x48] sm:$0xff]
    %v385 = vld [vmem:[#allocation9 + $0x50] sm:$0xff]
    %v386 = vld [vmem:[#allocation9 + $0x58] sm:$0xff]
    %v387 = vld [vmem:[#allocation9 + $0x60] sm:$0xff]
    %v388 = vld [vmem:[#allocation9 + $0x68] sm:$0xff]
    %v389 = vld [vmem:[#allocation9 + $0x70] sm:$0xff]
    %v390 = vld [vmem:[#allocation9 + $0x78] sm:$0xff]
    %v391 = vld [vmem:[#allocation9 + $0x80] sm:$0xff]
    %v392 = vld [vmem:[#allocation9 + $0x88] sm:$0xff]
    %v393 = vld [vmem:[#allocation9 + $0x90] sm:$0xff]
    %v394 = vld [vmem:[#allocation9 + $0x98] sm:$0xff]
    %v395 = vld [vmem:[#allocation9 + $0xa0] sm:$0xff]
    %v396 = vld [vmem:[#allocation9 + $0xa8] sm:$0xff]
    %v397 = vld [vmem:[#allocation9 + $0xb0] sm:$0xff]
    %v398 = vld [vmem:[#allocation9 + $0xb8] sm:$0xff]
    %v399 = vld [vmem:[#allocation9 + $0xc0] sm:$0xff]
    %v400 = vld [vmem:[#allocation9 + $0xc8] sm:$0xff]
    %v401 = vld [vmem:[#allocation9 + $0xd0] sm:$0xff]
    %v402 = vld [vmem:[#allocation9 + $0xd8] sm:$0xff]
    %v403 = vld [vmem:[#allocation9 + $0xe0] sm:$0xff]
    %v404 = vld [vmem:[#allocation9 + $0xe8] sm:$0xff]
    %v405 = vld [vmem:[#allocation9 + $0xf0] sm:$0xff]
    %v406 = vld [vmem:[#allocation9 + $0xf8] sm:$0xff]
    %v407 = vld [vmem:[#allocation9 + $0x100] sm:$0xff]
    %v408 = vld [vmem:[#allocation9 + $0x108] sm:$0xff]
    %v409 = vld [vmem:[#allocation9 + $0x110] sm:$0xff]
    %v410 = vld [vmem:[#allocation9 + $0x118] sm:$0xff]
    %v411 = vld [vmem:[#allocation9 + $0x120] sm:$0xff]
    %v412 = vld [vmem:[#allocation9 + $0x128] sm:$0xff]
    %v413 = vld [vmem:[#allocation9 + $0x130] sm:$0xff]
    %v414 = vld [vmem:[#allocation9 + $0x138] sm:$0xff]
    %v415 = vld [vmem:[#allocation9 + $0x140] sm:$0xff]
    %v416 = vld [vmem:[#allocation9 + $0x148] sm:$0xff]
    %v417 = vld [vmem:[#allocation9 + $0x150] sm:$0xff]
    %v418 = vld [vmem:[#allocation9 + $0x158] sm:$0xff]
    %v419 = vld [vmem:[#allocation9 + $0x160] sm:$0xff]
    %v420 = vld [vmem:[#allocation9 + $0x168] sm:$0xff]
    %v421 = vld [vmem:[#allocation9 + $0x170] sm:$0xff]
    %v422 = vld [vmem:[#allocation9 + $0x178] sm:$0xff]
    %v423 = vld [vmem:[#allocation9 + $0x180] sm:$0xff]
    %v424 = vld [vmem:[#allocation9 + $0x188] sm:$0xff]
    %v425 = vld [vmem:[#allocation9 + $0x190] sm:$0xff]
    %v426 = vld [vmem:[#allocation9 + $0x198] sm:$0xff]
    %v427 = vld [vmem:[#allocation9 + $0x1a0] sm:$0xff]
    %v428 = vld [vmem:[#allocation9 + $0x1a8] sm:$0xff]
    %v429 = vld [vmem:[#allocation9 + $0x1b0] sm:$0xff]
    %v430 = vld [vmem:[#allocation9 + $0x1b8] sm:$0xff]
    %v431 = vld [vmem:[#allocation9 + $0x1c0] sm:$0xff]
    %v432 = vld [vmem:[#allocation9 + $0x1c8] sm:$0xff]
    %v433 = vld [vmem:[#allocation9 + $0x1d0] sm:$0xff]
    %v434 = vld [vmem:[#allocation9 + $0x1d8] sm:$0xff]
    %v435 = vld [vmem:[#allocation9 + $0x1e0] sm:$0xff]
    %v436 = vld [vmem:[#allocation9 + $0x1e8] sm:$0xff]
    %v437 = vld [vmem:[#allocation9 + $0x1f0] sm:$0xff]
    %v438 = vld [vmem:[#allocation9 + $0x1f8] sm:$0xff]
    %v447 = vunpack.c.l.b16 %v367
    %v448 = vunpack.c.h.b16 %v367
    %v449 = vunpack.c.l.b16 %v368
    %v450 = vunpack.c.h.b16 %v368
    %v451 = vunpack.c.l.b16 %v369
    %v452 = vunpack.c.h.b16 %v369
    %v453 = vunpack.c.l.b16 %v370
    %v454 = vunpack.c.h.b16 %v370
    %v455 = vunpack.c.l.b16 %v371
    %v456 = vunpack.c.h.b16 %v371
    %v457 = vunpack.c.l.b16 %v372
    %v458 = vunpack.c.h.b16 %v372
    %v459 = vunpack.c.l.b16 %v373
    %v460 = vunpack.c.h.b16 %v373
    %v461 = vunpack.c.l.b16 %v374
    %v462 = vunpack.c.h.b16 %v374
    %v463 = vpack.c.b16 %v451, %v447
    %v464 = vpack.c.b16 %v452, %v448
    %v465 = vpack.c.b16 %v453, %v449
    %v466 = vpack.c.b16 %v454, %v450
    %v467 = vpack.c.b16 %v459, %v455
    %v468 = vpack.c.b16 %v460, %v456
    %v469 = vpack.c.b16 %v461, %v457
    %v470 = vpack.c.b16 %v462, %v458
    %v543 = vunpack.c.l.b16 %v375
    %v544 = vunpack.c.h.b16 %v375
    %v545 = vunpack.c.l.b16 %v376
    %v546 = vunpack.c.h.b16 %v376
    %v547 = vunpack.c.l.b16 %v377
    %v548 = vunpack.c.h.b16 %v377
    %v549 = vunpack.c.l.b16 %v378
    %v550 = vunpack.c.h.b16 %v378
    %v551 = vunpack.c.l.b16 %v379
    %v552 = vunpack.c.h.b16 %v379
    %v553 = vunpack.c.l.b16 %v380
    %v554 = vunpack.c.h.b16 %v380
    %v555 = vunpack.c.l.b16 %v381
    %v556 = vunpack.c.h.b16 %v381
    %v557 = vunpack.c.l.b16 %v382
    %v558 = vunpack.c.h.b16 %v382
    %v559 = vunpack.c.l.b16 %v383
    %v560 = vunpack.c.h.b16 %v383
    %v561 = vunpack.c.l.b16 %v384
    %v562 = vunpack.c.h.b16 %v384
    %v563 = vunpack.c.l.b16 %v385
    %v564 = vunpack.c.h.b16 %v385
    %v565 = vunpack.c.l.b16 %v386
    %v566 = vunpack.c.h.b16 %v386
    %v567 = vunpack.c.l.b16 %v387
    %v568 = vunpack.c.h.b16 %v387
    %v569 = vunpack.c.l.b16 %v388
    %v570 = vunpack.c.h.b16 %v388
    %v571 = vunpack.c.l.b16 %v389
    %v572 = vunpack.c.h.b16 %v389
    %v573 = vunpack.c.l.b16 %v390
    %v574 = vunpack.c.h.b16 %v390
    %v575 = vunpack.c.l.b16 %v391
    %v576 = vunpack.c.h.b16 %v391
    %v577 = vunpack.c.l.b16 %v392
    %v578 = vunpack.c.h.b16 %v392
    %v579 = vunpack.c.l.b16 %v393
    %v580 = vunpack.c.h.b16 %v393
    %v581 = vunpack.c.l.b16 %v394
    %v582 = vunpack.c.h.b16 %v394
    %v583 = vunpack.c.l.b16 %v395
    %v584 = vunpack.c.h.b16 %v395
    %v585 = vunpack.c.l.b16 %v396
    %v586 = vunpack.c.h.b16 %v396
    %v587 = vunpack.c.l.b16 %v397
    %v588 = vunpack.c.h.b16 %v397
    %v589 = vunpack.c.l.b16 %v398
    %v590 = vunpack.c.h.b16 %v398
    %v591 = vunpack.c.l.b16 %v399
    %v592 = vunpack.c.h.b16 %v399
    %v593 = vunpack.c.l.b16 %v400
    %v594 = vunpack.c.h.b16 %v400
    %v595 = vunpack.c.l.b16 %v401
    %v596 = vunpack.c.h.b16 %v401
    %v597 = vunpack.c.l.b16 %v402
    %v598 = vunpack.c.h.b16 %v402
    %v599 = vunpack.c.l.b16 %v403
    %v600 = vunpack.c.h.b16 %v403
    %v601 = vunpack.c.l.b16 %v404
    %v602 = vunpack.c.h.b16 %v404
    %v603 = vunpack.c.l.b16 %v405
    %v604 = vunpack.c.h.b16 %v405
    %v605 = vunpack.c.l.b16 %v406
    %v606 = vunpack.c.h.b16 %v406
    %v607 = vunpack.c.l.b16 %v407
    %v608 = vunpack.c.h.b16 %v407
    %v609 = vunpack.c.l.b16 %v408
    %v610 = vunpack.c.h.b16 %v408
    %v611 = vunpack.c.l.b16 %v409
    %v612 = vunpack.c.h.b16 %v409
    %v613 = vunpack.c.l.b16 %v410
    %v614 = vunpack.c.h.b16 %v410
    %v615 = vunpack.c.l.b16 %v411
    %v616 = vunpack.c.h.b16 %v411
    %v617 = vunpack.c.l.b16 %v412
    %v618 = vunpack.c.h.b16 %v412
    %v619 = vunpack.c.l.b16 %v413
    %v620 = vunpack.c.h.b16 %v413
    %v621 = vunpack.c.l.b16 %v414
    %v622 = vunpack.c.h.b16 %v414
    %v623 = vunpack.c.l.b16 %v415
    %v624 = vunpack.c.h.b16 %v415
    %v625 = vunpack.c.l.b16 %v416
    %v626 = vunpack.c.h.b16 %v416
    %v627 = vunpack.c.l.b16 %v417
    %v628 = vunpack.c.h.b16 %v417
    %v629 = vunpack.c.l.b16 %v418
    %v630 = vunpack.c.h.b16 %v418
    %v631 = vunpack.c.l.b16 %v419
    %v632 = vunpack.c.h.b16 %v419
    %v633 = vunpack.c.l.b16 %v420
    %v634 = vunpack.c.h.b16 %v420
    %v635 = vunpack.c.l.b16 %v421
    %v636 = vunpack.c.h.b16 %v421
    %v637 = vunpack.c.l.b16 %v422
    %v638 = vunpack.c.h.b16 %v422
    %v639 = vunpack.c.l.b16 %v423
    %v640 = vunpack.c.h.b16 %v423
    %v641 = vunpack.c.l.b16 %v424
    %v642 = vunpack.c.h.b16 %v424
    %v643 = vunpack.c.l.b16 %v425
    %v644 = vunpack.c.h.b16 %v425
    %v645 = vunpack.c.l.b16 %v426
    %v646 = vunpack.c.h.b16 %v426
    %v647 = vunpack.c.l.b16 %v427
    %v648 = vunpack.c.h.b16 %v427
    %v649 = vunpack.c.l.b16 %v428
    %v650 = vunpack.c.h.b16 %v428
    %v651 = vunpack.c.l.b16 %v429
    %v652 = vunpack.c.h.b16 %v429
    %v653 = vunpack.c.l.b16 %v430
    %v654 = vunpack.c.h.b16 %v430
    %v655 = vunpack.c.l.b16 %v431
    %v656 = vunpack.c.h.b16 %v431
    %v657 = vunpack.c.l.b16 %v432
    %v658 = vunpack.c.h.b16 %v432
    %v659 = vunpack.c.l.b16 %v433
    %v660 = vunpack.c.h.b16 %v433
    %v661 = vunpack.c.l.b16 %v434
    %v662 = vunpack.c.h.b16 %v434
    %v663 = vunpack.c.l.b16 %v435
    %v664 = vunpack.c.h.b16 %v435
    %v665 = vunpack.c.l.b16 %v436
    %v666 = vunpack.c.h.b16 %v436
    %v667 = vunpack.c.l.b16 %v437
    %v668 = vunpack.c.h.b16 %v437
    %v669 = vunpack.c.l.b16 %v438
    %v670 = vunpack.c.h.b16 %v438
    %v671 = vpack.c.b16 %v545, %v543
    %v672 = vpack.c.b16 %v546, %v544
    %v673 = vpack.c.b16 %v549, %v547
    %v674 = vpack.c.b16 %v550, %v548
    %v675 = vpack.c.b16 %v553, %v551
    %v676 = vpack.c.b16 %v554, %v552
    %v677 = vpack.c.b16 %v557, %v555
    %v678 = vpack.c.b16 %v558, %v556
    %v679 = vpack.c.b16 %v561, %v559
    %v680 = vpack.c.b16 %v562, %v560
    %v681 = vpack.c.b16 %v565, %v563
    %v682 = vpack.c.b16 %v566, %v564
    %v683 = vpack.c.b16 %v569, %v567
    %v684 = vpack.c.b16 %v570, %v568
    %v685 = vpack.c.b16 %v573, %v571
    %v686 = vpack.c.b16 %v574, %v572
    %v687 = vpack.c.b16 %v577, %v575
    %v688 = vpack.c.b16 %v578, %v576
    %v689 = vpack.c.b16 %v581, %v579
    %v690 = vpack.c.b16 %v582, %v580
    %v691 = vpack.c.b16 %v585, %v583
    %v692 = vpack.c.b16 %v586, %v584
    %v693 = vpack.c.b16 %v589, %v587
    %v694 = vpack.c.b16 %v590, %v588
    %v695 = vpack.c.b16 %v593, %v591
    %v696 = vpack.c.b16 %v594, %v592
    %v697 = vpack.c.b16 %v597, %v595
    %v698 = vpack.c.b16 %v598, %v596
    %v699 = vpack.c.b16 %v601, %v599
    %v700 = vpack.c.b16 %v602, %v600
    %v701 = vpack.c.b16 %v605, %v603
    %v702 = vpack.c.b16 %v606, %v604
    %v703 = vpack.c.b16 %v609, %v607
    %v704 = vpack.c.b16 %v610, %v608
    %v705 = vpack.c.b16 %v613, %v611
    %v706 = vpack.c.b16 %v614, %v612
    %v707 = vpack.c.b16 %v617, %v615
    %v708 = vpack.c.b16 %v618, %v616
    %v709 = vpack.c.b16 %v621, %v619
    %v710 = vpack.c.b16 %v622, %v620
    %v711 = vpack.c.b16 %v625, %v623
    %v712 = vpack.c.b16 %v626, %v624
    %v713 = vpack.c.b16 %v629, %v627
    %v714 = vpack.c.b16 %v630, %v628
    %v715 = vpack.c.b16 %v633, %v631
    %v716 = vpack.c.b16 %v634, %v632
    %v717 = vpack.c.b16 %v637, %v635
    %v718 = vpack.c.b16 %v638, %v636
    %v719 = vpack.c.b16 %v641, %v639
    %v720 = vpack.c.b16 %v642, %v640
    %v721 = vpack.c.b16 %v645, %v643
    %v722 = vpack.c.b16 %v646, %v644
    %v723 = vpack.c.b16 %v649, %v647
    %v724 = vpack.c.b16 %v650, %v648
    %v725 = vpack.c.b16 %v653, %v651
    %v726 = vpack.c.b16 %v654, %v652
    %v727 = vpack.c.b16 %v657, %v655
    %v728 = vpack.c.b16 %v658, %v656
    %v729 = vpack.c.b16 %v661, %v659
    %v730 = vpack.c.b16 %v662, %v660
    %v731 = vpack.c.b16 %v665, %v663
    %v732 = vpack.c.b16 %v666, %v664
    %v733 = vpack.c.b16 %v669, %v667
    %v734 = vpack.c.b16 %v670, %v668
    %799 = vmatprep.subr.bf16.mxu0 %v672
    %800 = vmatpush1.bf16.msra.mxu0 %v671
    %801 = vmatprep.subr.bf16.mxu0 %v674
    %802 = vmatpush1.bf16.msra.mxu0 %v673
    %803 = vmatprep.subr.bf16.mxu0 %v676
    %804 = vmatpush1.bf16.msra.mxu0 %v675
    %805 = vmatprep.subr.bf16.mxu0 %v678
    %806 = vmatpush1.bf16.msra.mxu0 %v677
    %807 = vmatprep.subr.bf16.mxu0 %v680
    %808 = vmatpush1.bf16.msra.mxu0 %v679
    %809 = vmatprep.subr.bf16.mxu0 %v682
    %810 = vmatpush1.bf16.msra.mxu0 %v681
    %811 = vmatprep.subr.bf16.mxu0 %v684
    %812 = vmatpush1.bf16.msra.mxu0 %v683
    %813 = vmatprep.subr.bf16.mxu0 %v686
    %814 = vmatpush1.bf16.msra.mxu0 %v685
    %815 = vmatprep.subr.bf16.mxu0 %v688
    %816 = vmatpush1.bf16.msra.mxu0 %v687
    %817 = vmatprep.subr.bf16.mxu0 %v690
    %818 = vmatpush1.bf16.msra.mxu0 %v689
    %819 = vmatprep.subr.bf16.mxu0 %v692
    %820 = vmatpush1.bf16.msra.mxu0 %v691
    %821 = vmatprep.subr.bf16.mxu0 %v694
    %822 = vmatpush1.bf16.msra.mxu0 %v693
    %823 = vmatprep.subr.bf16.mxu0 %v696
    %824 = vmatpush1.bf16.msra.mxu0 %v695
    %825 = vmatprep.subr.bf16.mxu0 %v698
    %826 = vmatpush1.bf16.msra.mxu0 %v697
    %827 = vmatprep.subr.bf16.mxu0 %v700
    %828 = vmatpush1.bf16.msra.mxu0 %v699
    %829 = vmatprep.subr.bf16.mxu0 %v702
    %830 = vmatpush1.bf16.msra.mxu0 %v701
    %831 = vmatprep.mubr.bf16.mxu0 %v464
    %832 = vmatmul.mubr.bf16.gmra.mrb[0].mxu0 %v463
    %v833 = vpop.f32.mrb[0].mxu0
    %v834 = vadd.f32 0.0, %v833
    %v835 = vpop.f32.mrb[0].mxu0
    %v836 = vadd.f32 0.0, %v835
    %v837 = vpop.f32.mrb[0].mxu0
    %v838 = vadd.f32 0.0, %v837
    %v839 = vpop.f32.mrb[0].mxu0
    %v840 = vadd.f32 0.0, %v839
    %841 = vmatprep.mubr.bf16.mxu0 %v468
    %842 = vmatmul.mubr.bf16.gmra.mrb[0].mxu0 %v467
    %v843 = vpop.f32.mrb[0].mxu0
    %v844 = vadd.f32 0.0, %v843
    %v845 = vpop.f32.mrb[0].mxu0
    %v846 = vadd.f32 0.0, %v845
    %v847 = vpop.f32.mrb[0].mxu0
    %v848 = vadd.f32 0.0, %v847
    %v849 = vpop.f32.mrb[0].mxu0
    %v850 = vadd.f32 0.0, %v849
    %851 = vdwg.mxu0
    %852 = vmatprep.subr.bf16.mxu0 %v704
    %853 = vmatpush1.bf16.msra.mxu0 %v703
    %854 = vmatprep.subr.bf16.mxu0 %v706
    %855 = vmatpush1.bf16.msra.mxu0 %v705
    %856 = vmatprep.subr.bf16.mxu0 %v708
    %857 = vmatpush1.bf16.msra.mxu0 %v707
    %858 = vmatprep.subr.bf16.mxu0 %v710
    %859 = vmatpush1.bf16.msra.mxu0 %v709
    %860 = vmatprep.subr.bf16.mxu0 %v712
    %861 = vmatpush1.bf16.msra.mxu0 %v711
    %862 = vmatprep.subr.bf16.mxu0 %v714
    %863 = vmatpush1.bf16.msra.mxu0 %v713
    %864 = vmatprep.subr.bf16.mxu0 %v716
    %865 = vmatpush1.bf16.msra.mxu0 %v715
    %866 = vmatprep.subr.bf16.mxu0 %v718
    %867 = vmatpush1.bf16.msra.mxu0 %v717
    %868 = vmatprep.subr.bf16.mxu0 %v720
    %869 = vmatpush1.bf16.msra.mxu0 %v719
    %870 = vmatprep.subr.bf16.mxu0 %v722
    %871 = vmatpush1.bf16.msra.mxu0 %v721
    %872 = vmatprep.subr.bf16.mxu0 %v724
    %873 = vmatpush1.bf16.msra.mxu0 %v723
    %874 = vmatprep.subr.bf16.mxu0 %v726
    %875 = vmatpush1.bf16.msra.mxu0 %v725
    %876 = vmatprep.subr.bf16.mxu0 %v728
    %877 = vmatpush1.bf16.msra.mxu0 %v727
    %878 = vmatprep.subr.bf16.mxu0 %v730
    %879 = vmatpush1.bf16.msra.mxu0 %v729
    %880 = vmatprep.subr.bf16.mxu0 %v732
    %881 = vmatpush1.bf16.msra.mxu0 %v731
    %882 = vmatprep.subr.bf16.mxu0 %v734
    %883 = vmatpush1.bf16.msra.mxu0 %v733
    %884 = vmatprep.mubr.bf16.mxu0 %v466
    %885 = vmatmul.mubr.bf16.gmra.mrb[0].mxu0 %v465
    %v886 = vpop.f32.mrb[0].mxu0
    %v887 = vadd.f32 %v834, %v886
    %v888 = vpop.f32.mrb[0].mxu0
    %v889 = vadd.f32 %v836, %v888
    %v890 = vpop.f32.mrb[0].mxu0
    %v891 = vadd.f32 %v838, %v890
    %v892 = vpop.f32.mrb[0].mxu0
    %v893 = vadd.f32 %v840, %v892
    %894 = vmatprep.mubr.bf16.mxu0 %v470
    %895 = vmatmul.mubr.bf16.gmra.mrb[0].mxu0 %v469
    %v896 = vpop.f32.mrb[0].mxu0
    %v897 = vadd.f32 %v844, %v896
    %v898 = vpop.f32.mrb[0].mxu0
    %v899 = vadd.f32 %v846, %v898
    %v900 = vpop.f32.mrb[0].mxu0
    %v901 = vadd.f32 %v848, %v900
    %v902 = vpop.f32.mrb[0].mxu0
    %v903 = vadd.f32 %v850, %v902
    %904 = vdwg.mxu0
    %v905 = vld [vmem:[#allocation2 + $0x8] sm:$0x88]
    %v906 = vld [vmem:[#allocation2 + $0x48] sm:$0x88]
    %vm907 = vsmask.f32 4368
    %vm908 = vmor %vm261, %vm907
    %v910 = vshrl.u32 %v905, 16
    %v912 = vrot.slane %v910, 7
    %v913 = vrot.slane %v912, 4
    %v915 = vshrl.u32 %v368, 16
    %v917 = vrot.slane %v915, 7
    %v918 = vshll.u32 %v368, 16
    %v920 = vor.u32 %v917, %v918
    %v921 = vsel %vm908, %v913, %v920
    %v922 = vrot.slane %v917, 4
    %v924 = vshrl.u32 %v370, 16
    %v926 = vrot.slane %v924, 7
    %v927 = vshll.u32 %v370, 16
    %v929 = vor.u32 %v926, %v927
    %v930 = vsel %vm908, %v922, %v929
    %v932 = vshrl.u32 %v906, 16
    %v934 = vrot.slane %v932, 7
    %v935 = vrot.slane %v934, 4
    %v937 = vshrl.u32 %v372, 16
    %v939 = vrot.slane %v937, 7
    %v940 = vshll.u32 %v372, 16
    %v942 = vor.u32 %v939, %v940
    %v943 = vsel %vm908, %v935, %v942
    %v944 = vrot.slane %v939, 4
    %v946 = vshrl.u32 %v374, 16
    %v948 = vrot.slane %v946, 7
    %v949 = vshll.u32 %v374, 16
    %v951 = vor.u32 %v948, %v949
    %v952 = vsel %vm908, %v944, %v951
    %v953 = vld [vmem:[#allocation10] sm:$0xf]
    %v954 = vld [vmem:[#allocation10 + $0x4] sm:$0xf]
    %v955 = vld [vmem:[#allocation10 + $0x8] sm:$0xf]
    %v956 = vld [vmem:[#allocation10 + $0xc] sm:$0xf]
    %v957 = vld [vmem:[#allocation10 + $0x10] sm:$0xf]
    %v958 = vld [vmem:[#allocation10 + $0x14] sm:$0xf]
    %v959 = vld [vmem:[#allocation10 + $0x18] sm:$0xf]
    %v960 = vld [vmem:[#allocation10 + $0x1c] sm:$0xf]
    %v961 = vld [vmem:[#allocation10 + $0x20] sm:$0xf]
    %v962 = vld [vmem:[#allocation10 + $0x24] sm:$0xf]
    %v963 = vld [vmem:[#allocation10 + $0x28] sm:$0xf]
    %v964 = vld [vmem:[#allocation10 + $0x2c] sm:$0xf]
    %v965 = vld [vmem:[#allocation10 + $0x30] sm:$0xf]
    %v966 = vld [vmem:[#allocation10 + $0x34] sm:$0xf]
    %v967 = vld [vmem:[#allocation10 + $0x38] sm:$0xf]
    %v968 = vld [vmem:[#allocation10 + $0x3c] sm:$0xf]
    %v969 = vld [vmem:[#allocation10 + $0x40] sm:$0xf]
    %v970 = vld [vmem:[#allocation10 + $0x44] sm:$0xf]
    %v971 = vld [vmem:[#allocation10 + $0x48] sm:$0xf]
    %v972 = vld [vmem:[#allocation10 + $0x4c] sm:$0xf]
    %v973 = vld [vmem:[#allocation10 + $0x50] sm:$0xf]
    %v974 = vld [vmem:[#allocation10 + $0x54] sm:$0xf]
    %v975 = vld [vmem:[#allocation10 + $0x58] sm:$0xf]
    %v976 = vld [vmem:[#allocation10 + $0x5c] sm:$0xf]
    %v977 = vld [vmem:[#allocation10 + $0x60] sm:$0xf]
    %v978 = vld [vmem:[#allocation10 + $0x64] sm:$0xf]
    %v979 = vld [vmem:[#allocation10 + $0x68] sm:$0xf]
    %v980 = vld [vmem:[#allocation10 + $0x6c] sm:$0xf]
    %v981 = vld [vmem:[#allocation10 + $0x70] sm:$0xf]
    %v982 = vld [vmem:[#allocation10 + $0x74] sm:$0xf]
    %v983 = vld [vmem:[#allocation10 + $0x78] sm:$0xf]
    %v984 = vld [vmem:[#allocation10 + $0x7c] sm:$0xf]
    %v985 = vunpack.c.l.b16 %v921
    %v986 = vunpack.c.h.b16 %v921
    %v987 = vunpack.c.l.b16 %v930
    %v988 = vunpack.c.h.b16 %v930
    %v989 = vunpack.c.l.b16 %v943
    %v990 = vunpack.c.h.b16 %v943
    %v991 = vunpack.c.l.b16 %v952
    %v992 = vunpack.c.h.b16 %v952
    %v993 = vpack.c.b16 %v987, %v985
    %v994 = vpack.c.b16 %v988, %v986
    %v995 = vpack.c.b16 %v991, %v989
    %v996 = vpack.c.b16 %v992, %v990
    %v1033 = vunpack.c.l.b16 %v953
    %v1034 = vunpack.c.l.b16 %v954
    %v1035 = vunpack.c.l.b16 %v955
    %v1036 = vunpack.c.l.b16 %v956
    %v1037 = vunpack.c.l.b16 %v957
    %v1038 = vunpack.c.l.b16 %v958
    %v1039 = vunpack.c.l.b16 %v959
    %v1040 = vunpack.c.l.b16 %v960
    %v1041 = vunpack.c.l.b16 %v961
    %v1042 = vunpack.c.l.b16 %v962
    %v1043 = vunpack.c.l.b16 %v963
    %v1044 = vunpack.c.l.b16 %v964
    %v1045 = vunpack.c.l.b16 %v965
    %v1046 = vunpack.c.l.b16 %v966
    %v1047 = vunpack.c.l.b16 %v967
    %v1048 = vunpack.c.l.b16 %v968
    %v1049 = vunpack.c.l.b16 %v969
    %v1050 = vunpack.c.l.b16 %v970
    %v1051 = vunpack.c.l.b16 %v971
    %v1052 = vunpack.c.l.b16 %v972
    %v1053 = vunpack.c.l.b16 %v973
    %v1054 = vunpack.c.l.b16 %v974
    %v1055 = vunpack.c.l.b16 %v975
    %v1056 = vunpack.c.l.b16 %v976
    %v1057 = vunpack.c.l.b16 %v977
    %v1058 = vunpack.c.l.b16 %v978
    %v1059 = vunpack.c.l.b16 %v979
    %v1060 = vunpack.c.l.b16 %v980
    %v1061 = vunpack.c.l.b16 %v981
    %v1062 = vunpack.c.l.b16 %v982
    %v1063 = vunpack.c.l.b16 %v983
    %v1064 = vunpack.c.l.b16 %v984
    %v1065 = vpack.c.b16 %v1034, %v1033
    %v1066 = vpack.c.b16 %v1036, %v1035
    %v1067 = vpack.c.b16 %v1038, %v1037
    %v1068 = vpack.c.b16 %v1040, %v1039
    %v1069 = vpack.c.b16 %v1042, %v1041
    %v1070 = vpack.c.b16 %v1044, %v1043
    %v1071 = vpack.c.b16 %v1046, %v1045
    %v1072 = vpack.c.b16 %v1048, %v1047
    %v1073 = vpack.c.b16 %v1050, %v1049
    %v1074 = vpack.c.b16 %v1052, %v1051
    %v1075 = vpack.c.b16 %v1054, %v1053
    %v1076 = vpack.c.b16 %v1056, %v1055
    %v1077 = vpack.c.b16 %v1058, %v1057
    %v1078 = vpack.c.b16 %v1060, %v1059
    %v1079 = vpack.c.b16 %v1062, %v1061
    %v1080 = vpack.c.b16 %v1064, %v1063
    %1097 = vmatprep.subr.bf16.mxu0 0
    %1098 = vmatpush1.bf16.msra.mxu0 %v1065
    %1099 = vmatprep.subr.bf16.mxu0 0
    %1100 = vmatpush1.bf16.msra.mxu0 %v1066
    %1101 = vmatprep.subr.bf16.mxu0 0
    %1102 = vmatpush1.bf16.msra.mxu0 %v1067
    %1103 = vmatprep.subr.bf16.mxu0 0
    %1104 = vmatpush1.bf16.msra.mxu0 %v1068
    %1105 = vmatprep.subr.bf16.mxu0 0
    %1106 = vmatpush1.bf16.msra.mxu0 %v1069
    %1107 = vmatprep.subr.bf16.mxu0 0
    %1108 = vmatpush1.bf16.msra.mxu0 %v1070
    %1109 = vmatprep.subr.bf16.mxu0 0
    %1110 = vmatpush1.bf16.msra.mxu0 %v1071
    %1111 = vmatprep.subr.bf16.mxu0 0
    %1112 = vmatpush1.bf16.msra.mxu0 %v1072
    %1113 = vmatprep.subr.bf16.mxu0 0
    %1114 = vmatpush1.bf16.msra.mxu0 %v1073
    %1115 = vmatprep.subr.bf16.mxu0 0
    %1116 = vmatpush1.bf16.msra.mxu0 %v1074
    %1117 = vmatprep.subr.bf16.mxu0 0
    %1118 = vmatpush1.bf16.msra.mxu0 %v1075
    %1119 = vmatprep.subr.bf16.mxu0 0
    %1120 = vmatpush1.bf16.msra.mxu0 %v1076
    %1121 = vmatprep.subr.bf16.mxu0 0
    %1122 = vmatpush1.bf16.msra.mxu0 %v1077
    %1123 = vmatprep.subr.bf16.mxu0 0
    %1124 = vmatpush1.bf16.msra.mxu0 %v1078
    %1125 = vmatprep.subr.bf16.mxu0 0
    %1126 = vmatpush1.bf16.msra.mxu0 %v1079
    %1127 = vmatprep.subr.bf16.mxu0 0
    %1128 = vmatpush1.bf16.msra.mxu0 %v1080
    %1129 = vmatprep.mubr.bf16.mxu0 %v994
    %1130 = vmatmul.mubr.bf16.gmra.mrb[0].mxu0 %v993
    %v1131 = vpop.f32.mrb[0].mxu0
    %v1132 = vadd.f32 0.0, %v1131
    %v1133 = vpop.f32.mrb[0].mxu0
    %v1134 = vpop.f32.mrb[0].mxu0
    %v1135 = vadd.f32 0.0, %v1134
    %v1136 = vpop.f32.mrb[0].mxu0
    %1137 = vmatprep.mubr.bf16.mxu0 %v996
    %1138 = vmatmul.mubr.bf16.gmra.mrb[0].mxu0 %v995
    %v1139 = vpop.f32.mrb[0].mxu0
    %v1140 = vadd.f32 0.0, %v1139
    %v1141 = vpop.f32.mrb[0].mxu0
    %v1142 = vpop.f32.mrb[0].mxu0
    %v1143 = vadd.f32 0.0, %v1142
    %v1144 = vpop.f32.mrb[0].mxu0
    %1145 = vdwg.mxu0
    %v1146 = vadd.f32 %v887, %v1132
    %v1147 = vadd.f32 %v891, %v1135
    %v1148 = vadd.f32 %v897, %v1140
    %v1149 = vadd.f32 %v901, %v1143
    %v1150 = vld [vmem:[#allocation2 + $0x10] sm:$0xff]
    %v1151 = vld [vmem:[#allocation2 + $0x20] sm:$0xff]
    %v1152 = vld [vmem:[#allocation2 + $0x30] sm:$0x11]
    %v1153 = vld [vmem:[#allocation2 + $0x50] sm:$0xff]
    %v1154 = vld [vmem:[#allocation2 + $0x60] sm:$0xff]
    %v1155 = vld [vmem:[#allocation2 + $0x70] sm:$0x11]
    %vm1156 = vsmask.f32 3328
    %vm1157 = vsmask.f32 7440
    %vm1158 = vmor %vm1156, %vm1157
    %v1160 = vshrl.u32 %v1150, 16
    %v1162 = vrot.slane %v1160, 4
    %v1163 = vshll.u32 %v1150, 16
    %v1165 = vrot.slane %v1163, 5
    %v1166 = vor.u32 %v1162, %v1165
    %v1167 = vrot.slane %v1166, 4
    %v1169 = vshll.u32 %v1151, 16
    %v1171 = vrot.slane %v1169, 5
    %v1172 = vsel %vm1158, %v1167, %v1171
    %v1173 = vshrl.u32 %v1151, 16
    %v1175 = vrot.slane %v1173, 4
    %v1176 = vor.u32 %v1175, %v1171
    %v1177 = vrot.slane %v1176, 4
    %v1179 = vshll.u32 %v1152, 16
    %v1181 = vrot.slane %v1179, 5
    %v1182 = vsel %vm1158, %v1177, %v1181
    %v1184 = vshrl.u32 %v1153, 16
    %v1186 = vrot.slane %v1184, 4
    %v1187 = vshll.u32 %v1153, 16
    %v1189 = vrot.slane %v1187, 5
    %v1190 = vor.u32 %v1186, %v1189
    %v1191 = vrot.slane %v1190, 4
    %v1193 = vshll.u32 %v1154, 16
    %v1195 = vrot.slane %v1193, 5
    %v1196 = vsel %vm1158, %v1191, %v1195
    %v1197 = vshrl.u32 %v1154, 16
    %v1199 = vrot.slane %v1197, 4
    %v1200 = vor.u32 %v1199, %v1195
    %v1201 = vrot.slane %v1200, 4
    %v1203 = vshll.u32 %v1155, 16
    %v1205 = vrot.slane %v1203, 5
    %v1206 = vsel %vm1158, %v1201, %v1205
    %s1207 = scalar_lea.vmem [#allocation10], 128
    %v1208 = vld [vmem:[%s1207] sm:$0xf]
    %v1209 = vld [vmem:[%s1207 + $0x4] sm:$0xf]
    %v1210 = vld [vmem:[%s1207 + $0x8] sm:$0xf]
    %v1211 = vld [vmem:[%s1207 + $0xc] sm:$0xf]
    %v1212 = vld [vmem:[%s1207 + $0x10] sm:$0xf]
    %v1213 = vld [vmem:[%s1207 + $0x14] sm:$0xf]
    %v1214 = vld [vmem:[%s1207 + $0x18] sm:$0xf]
    %v1215 = vld [vmem:[%s1207 + $0x1c] sm:$0xf]
    %v1216 = vld [vmem:[%s1207 + $0x20] sm:$0xf]
    %v1217 = vld [vmem:[%s1207 + $0x24] sm:$0xf]
    %v1218 = vld [vmem:[%s1207 + $0x28] sm:$0xf]
    %v1219 = vld [vmem:[%s1207 + $0x2c] sm:$0xf]
    %v1220 = vld [vmem:[%s1207 + $0x30] sm:$0xf]
    %v1221 = vld [vmem:[%s1207 + $0x34] sm:$0xf]
    %v1222 = vld [vmem:[%s1207 + $0x38] sm:$0xf]
    %v1223 = vld [vmem:[%s1207 + $0x3c] sm:$0xf]
    %v1224 = vld [vmem:[%s1207 + $0x40] sm:$0xf]
    %v1225 = vld [vmem:[%s1207 + $0x44] sm:$0xf]
    %v1226 = vld [vmem:[%s1207 + $0x48] sm:$0xf]
    %v1227 = vld [vmem:[%s1207 + $0x4c] sm:$0xf]
    %v1228 = vld [vmem:[%s1207 + $0x50] sm:$0xf]
    %v1229 = vld [vmem:[%s1207 + $0x54] sm:$0xf]
    %v1230 = vld [vmem:[%s1207 + $0x58] sm:$0xf]
    %v1231 = vld [vmem:[%s1207 + $0x5c] sm:$0xf]
    %v1232 = vld [vmem:[%s1207 + $0x60] sm:$0xf]
    %v1233 = vld [vmem:[%s1207 + $0x64] sm:$0xf]
    %v1234 = vld [vmem:[%s1207 + $0x68] sm:$0xf]
    %v1235 = vld [vmem:[%s1207 + $0x6c] sm:$0xf]
    %v1236 = vld [vmem:[%s1207 + $0x70] sm:$0xf]
    %v1237 = vld [vmem:[%s1207 + $0x74] sm:$0xf]
    %v1238 = vld [vmem:[%s1207 + $0x78] sm:$0xf]
    %v1239 = vld [vmem:[%s1207 + $0x7c] sm:$0xf]
    %v1240 = vunpack.c.l.b16 %v1172
    %v1241 = vunpack.c.h.b16 %v1172
    %v1242 = vunpack.c.l.b16 %v1182
    %v1243 = vunpack.c.h.b16 %v1182
    %v1244 = vunpack.c.l.b16 %v1196
    %v1245 = vunpack.c.h.b16 %v1196
    %v1246 = vunpack.c.l.b16 %v1206
    %v1247 = vunpack.c.h.b16 %v1206
    %v1248 = vpack.c.b16 %v1242, %v1240
    %v1249 = vpack.c.b16 %v1243, %v1241
    %v1250 = vpack.c.b16 %v1246, %v1244
    %v1251 = vpack.c.b16 %v1247, %v1245
    %v1288 = vunpack.c.l.b16 %v1208
    %v1289 = vunpack.c.l.b16 %v1209
    %v1290 = vunpack.c.l.b16 %v1210
    %v1291 = vunpack.c.l.b16 %v1211
    %v1292 = vunpack.c.l.b16 %v1212
    %v1293 = vunpack.c.l.b16 %v1213
    %v1294 = vunpack.c.l.b16 %v1214
    %v1295 = vunpack.c.l.b16 %v1215
    %v1296 = vunpack.c.l.b16 %v1216
    %v1297 = vunpack.c.l.b16 %v1217
    %v1298 = vunpack.c.l.b16 %v1218
    %v1299 = vunpack.c.l.b16 %v1219
    %v1300 = vunpack.c.l.b16 %v1220
    %v1301 = vunpack.c.l.b16 %v1221
    %v1302 = vunpack.c.l.b16 %v1222
    %v1303 = vunpack.c.l.b16 %v1223
    %v1304 = vunpack.c.l.b16 %v1224
    %v1305 = vunpack.c.l.b16 %v1225
    %v1306 = vunpack.c.l.b16 %v1226
    %v1307 = vunpack.c.l.b16 %v1227
    %v1308 = vunpack.c.l.b16 %v1228
    %v1309 = vunpack.c.l.b16 %v1229
    %v1310 = vunpack.c.l.b16 %v1230
    %v1311 = vunpack.c.l.b16 %v1231
    %v1312 = vunpack.c.l.b16 %v1232
    %v1313 = vunpack.c.l.b16 %v1233
    %v1314 = vunpack.c.l.b16 %v1234
    %v1315 = vunpack.c.l.b16 %v1235
    %v1316 = vunpack.c.l.b16 %v1236
    %v1317 = vunpack.c.l.b16 %v1237
    %v1318 = vunpack.c.l.b16 %v1238
    %v1319 = vunpack.c.l.b16 %v1239
    %v1320 = vpack.c.b16 %v1289, %v1288
    %v1321 = vpack.c.b16 %v1291, %v1290
    %v1322 = vpack.c.b16 %v1293, %v1292
    %v1323 = vpack.c.b16 %v1295, %v1294
    %v1324 = vpack.c.b16 %v1297, %v1296
    %v1325 = vpack.c.b16 %v1299, %v1298
    %v1326 = vpack.c.b16 %v1301, %v1300
    %v1327 = vpack.c.b16 %v1303, %v1302
    %v1328 = vpack.c.b16 %v1305, %v1304
    %v1329 = vpack.c.b16 %v1307, %v1306
    %v1330 = vpack.c.b16 %v1309, %v1308
    %v1331 = vpack.c.b16 %v1311, %v1310
    %v1332 = vpack.c.b16 %v1313, %v1312
    %v1333 = vpack.c.b16 %v1315, %v1314
    %v1334 = vpack.c.b16 %v1317, %v1316
    %v1335 = vpack.c.b16 %v1319, %v1318
    %1352 = vmatprep.subr.bf16.mxu0 0
    %1353 = vmatpush1.bf16.msra.mxu0 %v1320
    %1354 = vmatprep.subr.bf16.mxu0 0
    %1355 = vmatpush1.bf16.msra.mxu0 %v1321
    %1356 = vmatprep.subr.bf16.mxu0 0
    %1357 = vmatpush1.bf16.msra.mxu0 %v1322
    %1358 = vmatprep.subr.bf16.mxu0 0
    %1359 = vmatpush1.bf16.msra.mxu0 %v1323
    %1360 = vmatprep.subr.bf16.mxu0 0
    %1361 = vmatpush1.bf16.msra.mxu0 %v1324
    %1362 = vmatprep.subr.bf16.mxu0 0
    %1363 = vmatpush1.bf16.msra.mxu0 %v1325
    %1364 = vmatprep.subr.bf16.mxu0 0
    %1365 = vmatpush1.bf16.msra.mxu0 %v1326
    %1366 = vmatprep.subr.bf16.mxu0 0
    %1367 = vmatpush1.bf16.msra.mxu0 %v1327
    %1368 = vmatprep.subr.bf16.mxu0 0
    %1369 = vmatpush1.bf16.msra.mxu0 %v1328
    %1370 = vmatprep.subr.bf16.mxu0 0
    %1371 = vmatpush1.bf16.msra.mxu0 %v1329
    %1372 = vmatprep.subr.bf16.mxu0 0
    %1373 = vmatpush1.bf16.msra.mxu0 %v1330
    %1374 = vmatprep.subr.bf16.mxu0 0
    %1375 = vmatpush1.bf16.msra.mxu0 %v1331
    %1376 = vmatprep.subr.bf16.mxu0 0
    %1377 = vmatpush1.bf16.msra.mxu0 %v1332
    %1378 = vmatprep.subr.bf16.mxu0 0
    %1379 = vmatpush1.bf16.msra.mxu0 %v1333
    %1380 = vmatprep.subr.bf16.mxu0 0
    %1381 = vmatpush1.bf16.msra.mxu0 %v1334
    %1382 = vmatprep.subr.bf16.mxu0 0
    %1383 = vmatpush1.bf16.msra.mxu0 %v1335
    %1384 = vmatprep.mubr.bf16.mxu0 %v1249
    %1385 = vmatmul.mubr.bf16.gmra.mrb[0].mxu0 %v1248
    %v1386 = vpop.f32.mrb[0].mxu0
    %v1387 = vadd.f32 0.0, %v1386
    %v1388 = vpop.f32.mrb[0].mxu0
    %v1389 = vpop.f32.mrb[0].mxu0
    %v1390 = vadd.f32 0.0, %v1389
    %v1391 = vpop.f32.mrb[0].mxu0
    %1392 = vmatprep.mubr.bf16.mxu0 %v1251
    %1393 = vmatmul.mubr.bf16.gmra.mrb[0].mxu0 %v1250
    %v1394 = vpop.f32.mrb[0].mxu0
    %v1395 = vadd.f32 0.0, %v1394
    %v1396 = vpop.f32.mrb[0].mxu0
    %v1397 = vpop.f32.mrb[0].mxu0
    %v1398 = vadd.f32 0.0, %v1397
    %v1399 = vpop.f32.mrb[0].mxu0
    %1400 = vdwg.mxu0
    %v1401 = vadd.f32 %v889, %v1387
    %v1402 = vadd.f32 %v893, %v1390
    %v1403 = vadd.f32 %v899, %v1395
    %v1404 = vadd.f32 %v903, %v1398
    %v1405 = vld [vmem:[#allocation15] sm:$0xff]
    %v1406 = vld [vmem:[#allocation15 + $0x8] sm:$0xff]
    %v1407 = vadd.f32 %v1146, %v1405
    %v1408 = vadd.f32 %v1147, %v1406
    %v1409 = vadd.f32 %v1148, %v1405
    %v1410 = vadd.f32 %v1149, %v1406
    %v1411 = vld [vmem:[#allocation16] sm:$0xff]
    %v1412 = vld [vmem:[#allocation16 + $0x8] sm:$0xff]
    %v1413 = vadd.f32 %v1401, %v1411
    %v1414 = vadd.f32 %v1402, %v1412
    %v1415 = vadd.f32 %v1403, %v1411
    %v1416 = vadd.f32 %v1404, %v1412
    %vm1417 = vcmp.ge.f32.partialorder %v1407, 0.0
    %vm1418 = vcmp.ge.f32.partialorder %v1408, 0.0
    %vm1419 = vcmp.ge.f32.partialorder %v1409, 0.0
    %vm1420 = vcmp.ge.f32.partialorder %v1410, 0.0
    %v1421 = vmul.f32 %v1407, 0.01
    %v1422 = vmul.f32 %v1408, 0.01
    %v1423 = vmul.f32 %v1409, 0.01
    %v1424 = vmul.f32 %v1410, 0.01
    %v1425 = vsel %vm1417, %v1407, %v1421
    %v1426 = vsel %vm1418, %v1408, %v1422
    %v1427 = vsel %vm1419, %v1409, %v1423
    %v1428 = vsel %vm1420, %v1410, %v1424
    %vm1429 = vcmp.ge.f32.partialorder %v1413, 0.0
    %vm1430 = vcmp.ge.f32.partialorder %v1414, 0.0
    %vm1431 = vcmp.ge.f32.partialorder %v1415, 0.0
    %vm1432 = vcmp.ge.f32.partialorder %v1416, 0.0
    %v1433 = vmul.f32 %v1413, 0.01
    %v1434 = vmul.f32 %v1414, 0.01
    %v1435 = vmul.f32 %v1415, 0.01
    %v1436 = vmul.f32 %v1416, 0.01
    %v1437 = vsel %vm1429, %v1413, %v1433
    %v1438 = vsel %vm1430, %v1414, %v1434
    %v1439 = vsel %vm1431, %v1415, %v1435
    %v1440 = vsel %vm1432, %v1416, %v1436
    %v1441 = vld [vmem:[%s9] sm:$0x1]
    %v1442 = vld [vmem:[%s10] sm:$0x1]
    %v1443 = vadd.f32 %v1425, %v1426
    %v1444 = vadd.f32 %v1443, %v1427
    %v1445 = vadd.f32 %v1444, %v1428
    %v1446 = vrot.slane %v1445, 4
    %v1447 = vadd.f32 %v1445, %v1446
    %v1448 = vrot.slane %v1447, 2
    %v1449 = vadd.f32 %v1447, %v1448
    %v1450 = vrot.slane %v1449, 1
    %v1451 = vadd.f32 %v1449, %v1450
    %v1452 = vadd.f32 %v1437, %v1438
    %v1453 = vadd.f32 %v1452, %v1439
    %v1454 = vadd.f32 %v1453, %v1440
    %v1455 = vrot.slane %v1454, 4
    %v1456 = vadd.f32 %v1454, %v1455
    %v1457 = vrot.slane %v1456, 2
    %v1458 = vadd.f32 %v1456, %v1457
    %v1459 = vrot.slane %v1458, 1
    %v1460 = vadd.f32 %v1458, %v1459
    %v1461 = vadd.f32 %v1451, %v1460
    %1462 = vmatprep.subr.mxu0 0.0
    %1463 = vmatpush1.msra.mxu0 %v351
    %1464 = vmatprep.subr.mxu0 0.0
    %1465 = vmatpush1.msra.mxu0 %v352
    %1466 = vmatprep.subr.mxu0 0.0
    %1467 = vmatpush1.msra.mxu0 %v353
    %1468 = vmatprep.subr.mxu0 0.0
    %1469 = vmatpush1.msra.mxu0 %v354
    %1470 = vmatprep.subr.mxu0 0.0
    %1471 = vmatpush1.msra.mxu0 %v355
    %1472 = vmatprep.subr.mxu0 0.0
    %1473 = vmatpush1.msra.mxu0 %v356
    %1474 = vmatprep.subr.mxu0 0.0
    %1475 = vmatpush1.msra.mxu0 %v357
    %1476 = vmatprep.subr.mxu0 0.0
    %1477 = vmatpush1.msra.mxu0 %v358
    %1478 = vmatprep.subr.mxu0 0.0
    %1479 = vmatpush1.msra.mxu0 %v359
    %1480 = vmatprep.subr.mxu0 0.0
    %1481 = vmatpush1.msra.mxu0 %v360
    %1482 = vmatprep.subr.mxu0 0.0
    %1483 = vmatpush1.msra.mxu0 %v361
    %1484 = vmatprep.subr.mxu0 0.0
    %1485 = vmatpush1.msra.mxu0 %v362
    %1486 = vmatprep.subr.mxu0 0.0
    %1487 = vmatpush1.msra.mxu0 %v363
    %1488 = vmatprep.subr.mxu0 0.0
    %1489 = vmatpush1.msra.mxu0 %v364
    %1490 = vmatprep.subr.mxu0 0.0
    %1491 = vmatpush1.msra.mxu0 %v365
    %1492 = vmatprep.subr.mxu0 0.0
    %1493 = vmatpush1.msra.mxu0 %v366
    %1494 = vmatprep.subr.mxu0 0.0
    %1495 = vmatpush1.msra.mxu0 0.0
    %1496 = vmatprep.subr.mxu0 0.0
    %1497 = vmatpush1.msra.mxu0 0.0
    %1498 = vmatprep.subr.mxu0 0.0
    %1499 = vmatpush1.msra.mxu0 0.0
    %1500 = vmatprep.subr.mxu0 0.0
    %1501 = vmatpush1.msra.mxu0 0.0
    %1502 = vmatprep.subr.mxu0 0.0
    %1503 = vmatpush1.msra.mxu0 0.0
    %1504 = vmatprep.subr.mxu0 0.0
    %1505 = vmatpush1.msra.mxu0 0.0
    %1506 = vmatprep.subr.mxu0 0.0
    %1507 = vmatpush1.msra.mxu0 0.0
    %1508 = vmatprep.subr.mxu0 0.0
    %1509 = vmatpush1.msra.mxu0 0.0
    %1510 = vmatprep.subr.mxu0 0.0
    %1511 = vmatpush1.msra.mxu0 0.0
    %1512 = vmatprep.subr.mxu0 0.0
    %1513 = vmatpush1.msra.mxu0 0.0
    %1514 = vmatprep.subr.mxu0 0.0
    %1515 = vmatpush1.msra.mxu0 0.0
    %1516 = vmatprep.subr.mxu0 0.0
    %1517 = vmatpush1.msra.mxu0 0.0
    %1518 = vmatprep.subr.mxu0 0.0
    %1519 = vmatpush1.msra.mxu0 0.0
    %1520 = vmatprep.subr.mxu0 0.0
    %1521 = vmatpush1.msra.mxu0 0.0
    %1522 = vmatprep.subr.mxu0 0.0
    %1523 = vmatpush1.msra.mxu0 0.0
    %1524 = vmatprep.subr.mxu0 0.0
    %1525 = vmatpush1.msra.mxu0 0.0
    %1526 = vmatprep.mubr.f32.mxu0 0.0
    %1527 = vmatmul.mubr.f32.gmra.mrb[0].mxu0 %v1461
    %v1528 = vpop.f32.mrb[0].mxu0
    %v1529 = vadd.f32 0.0, %v1528
    %v1530 = vpop.f32.mrb[0].mxu0
    %1531 = vdwg.mxu0
    %v1532 = vlaneseq
    %v1533 = vshrl.u32 %v1532, 7
    %v1534 = vsub.s32 0, %v1533
    %v1535 = vrot.slane %v1529, %v1534
    %v1536 = vsub.f32 %v1425, %v1535
    %v1537 = vsub.f32 %v1426, %v1535
    %v1538 = vsub.f32 %v1427, %v1535
    %v1539 = vsub.f32 %v1428, %v1535
    %v1540 = vsub.f32 %v1437, %v1535
    %v1541 = vsub.f32 %v1438, %v1535
    %v1542 = vsub.f32 %v1439, %v1535
    %v1543 = vsub.f32 %v1440, %v1535
    %v1544 = vmul.f32 %v1536, %v1536
    %v1545 = vmul.f32 %v1537, %v1537
    %v1546 = vmul.f32 %v1538, %v1538
    %v1547 = vmul.f32 %v1539, %v1539
    %v1548 = vadd.f32 %v1544, %v1545
    %v1549 = vadd.f32 %v1548, %v1546
    %v1550 = vadd.f32 %v1549, %v1547
    %v1551 = vrot.slane %v1550, 4
    %v1552 = vadd.f32 %v1550, %v1551
    %v1553 = vrot.slane %v1552, 2
    %v1554 = vadd.f32 %v1552, %v1553
    %v1555 = vrot.slane %v1554, 1
    %v1556 = vadd.f32 %v1554, %v1555
    %v1557 = vmul.f32 %v1540, %v1540
    %v1558 = vmul.f32 %v1541, %v1541
    %v1559 = vmul.f32 %v1542, %v1542
    %v1560 = vmul.f32 %v1543, %v1543
    %v1561 = vadd.f32 %v1557, %v1558
    %v1562 = vadd.f32 %v1561, %v1559
    %v1563 = vadd.f32 %v1562, %v1560
    %v1564 = vrot.slane %v1563, 4
    %v1565 = vadd.f32 %v1563, %v1564
    %v1566 = vrot.slane %v1565, 2
    %v1567 = vadd.f32 %v1565, %v1566
    %v1568 = vrot.slane %v1567, 1
    %v1569 = vadd.f32 %v1567, %v1568
    %v1570 = vadd.f32 %v1556, %v1569
    %1571 = vmatprep.subr.mxu0 0.0
    %1572 = vmatpush1.msra.mxu0 %v351
    %1573 = vmatprep.subr.mxu0 0.0
    %1574 = vmatpush1.msra.mxu0 %v352
    %1575 = vmatprep.subr.mxu0 0.0
    %1576 = vmatpush1.msra.mxu0 %v353
    %1577 = vmatprep.subr.mxu0 0.0
    %1578 = vmatpush1.msra.mxu0 %v354
    %1579 = vmatprep.subr.mxu0 0.0
    %1580 = vmatpush1.msra.mxu0 %v355
    %1581 = vmatprep.subr.mxu0 0.0
    %1582 = vmatpush1.msra.mxu0 %v356
    %1583 = vmatprep.subr.mxu0 0.0
    %1584 = vmatpush1.msra.mxu0 %v357
    %1585 = vmatprep.subr.mxu0 0.0
    %1586 = vmatpush1.msra.mxu0 %v358
    %1587 = vmatprep.subr.mxu0 0.0
    %1588 = vmatpush1.msra.mxu0 %v359
    %1589 = vmatprep.subr.mxu0 0.0
    %1590 = vmatpush1.msra.mxu0 %v360
    %1591 = vmatprep.subr.mxu0 0.0
    %1592 = vmatpush1.msra.mxu0 %v361
    %1593 = vmatprep.subr.mxu0 0.0
    %1594 = vmatpush1.msra.mxu0 %v362
    %1595 = vmatprep.subr.mxu0 0.0
    %1596 = vmatpush1.msra.mxu0 %v363
    %1597 = vmatprep.subr.mxu0 0.0
    %1598 = vmatpush1.msra.mxu0 %v364
    %1599 = vmatprep.subr.mxu0 0.0
    %1600 = vmatpush1.msra.mxu0 %v365
    %1601 = vmatprep.subr.mxu0 0.0
    %1602 = vmatpush1.msra.mxu0 %v366
    %1603 = vmatprep.subr.mxu0 0.0
    %1604 = vmatpush1.msra.mxu0 0.0
    %1605 = vmatprep.subr.mxu0 0.0
    %1606 = vmatpush1.msra.mxu0 0.0
    %1607 = vmatprep.subr.mxu0 0.0
    %1608 = vmatpush1.msra.mxu0 0.0
    %1609 = vmatprep.subr.mxu0 0.0
    %1610 = vmatpush1.msra.mxu0 0.0
    %1611 = vmatprep.subr.mxu0 0.0
    %1612 = vmatpush1.msra.mxu0 0.0
    %1613 = vmatprep.subr.mxu0 0.0
    %1614 = vmatpush1.msra.mxu0 0.0
    %1615 = vmatprep.subr.mxu0 0.0
    %1616 = vmatpush1.msra.mxu0 0.0
    %1617 = vmatprep.subr.mxu0 0.0
    %1618 = vmatpush1.msra.mxu0 0.0
    %1619 = vmatprep.subr.mxu0 0.0
    %1620 = vmatpush1.msra.mxu0 0.0
    %1621 = vmatprep.subr.mxu0 0.0
    %1622 = vmatpush1.msra.mxu0 0.0
    %1623 = vmatprep.subr.mxu0 0.0
    %1624 = vmatpush1.msra.mxu0 0.0
    %1625 = vmatprep.subr.mxu0 0.0
    %1626 = vmatpush1.msra.mxu0 0.0
    %1627 = vmatprep.subr.mxu0 0.0
    %1628 = vmatpush1.msra.mxu0 0.0
    %1629 = vmatprep.subr.mxu0 0.0
    %1630 = vmatpush1.msra.mxu0 0.0
    %1631 = vmatprep.subr.mxu0 0.0
    %1632 = vmatpush1.msra.mxu0 0.0
    %1633 = vmatprep.subr.mxu0 0.0
    %1634 = vmatpush1.msra.mxu0 0.0
    %1635 = vmatprep.mubr.f32.mxu0 0.0
    %1636 = vmatmul.mubr.f32.gmra.mrb[0].mxu0 %v1570
    %v1637 = vpop.f32.mrb[0].mxu0
    %v1638 = vadd.f32 1e-05, %v1637
    %v1639 = vpop.f32.mrb[0].mxu0
    %1640 = vdwg.mxu0
    %v1641 = vrsqrt.pop %v1638
    %v1642 = vmul.f32 %v1641, %v1441
    %v1643 = vlaneseq
    %v1644 = vshrl.u32 %v1643, 7
    %v1645 = vsub.s32 0, %v1644
    %v1646 = vrot.slane %v1642, %v1645
    %v1647 = vmul.f32 %v1536, %v1646
    %v1648 = vmul.f32 %v1537, %v1646
    %v1649 = vmul.f32 %v1538, %v1646
    %v1650 = vmul.f32 %v1539, %v1646
    %v1652 = vlaneseq
    %v1653 = vshrl.u32 %v1652, 7
    %v1654 = vsub.s32 0, %v1653
    %v1655 = vrot.slane %v1442, %v1654
    %v1657 = vadd.f32 %v1647, %v1655
    %v1658 = vadd.f32 %v1648, %v1655
    %v1659 = vadd.f32 %v1649, %v1655
    %v1660 = vadd.f32 %v1650, %v1655
    %v1661 = vmul.f32 %v1540, %v1646
    %v1662 = vmul.f32 %v1541, %v1646
    %v1663 = vmul.f32 %v1542, %v1646
    %v1664 = vmul.f32 %v1543, %v1646
    %v1665 = vadd.f32 %v1661, %v1655
    %v1666 = vadd.f32 %v1662, %v1655
    %v1667 = vadd.f32 %v1663, %v1655
    %v1668 = vadd.f32 %v1664, %v1655
    %v1669 = vld [vmem:[#allocation3] sm:$0x88]
    %v1670 = vsel %vm247, 0, %v1669
    %1671 = vst [vmem:[#allocation3] sm:$0x88] %v1670
    %v1672 = vld [vmem:[#allocation3 + $0x20] sm:$0x88]
    %v1673 = vsel %vm247, 0, %v1672
    %1674 = vst [vmem:[#allocation3 + $0x20] sm:$0x88] %v1673
    %v1675 = vld [vmem:[#allocation3 + $0x18] sm:$0x11]
    %v1676 = vsel %vm266, 0, %v1675
    %1677 = vst [vmem:[#allocation3 + $0x18] sm:$0x11] %v1676
    %v1678 = vld [vmem:[#allocation3 + $0x38] sm:$0x11]
    %v1679 = vsel %vm266, 0, %v1678
    %1680 = vst [vmem:[#allocation3 + $0x38] sm:$0x11] %v1679
    %v1681 = vpack.c.bf16 %v1658, %v1657
    %v1682 = vpack.c.bf16 %v1660, %v1659
    %v1685 = vunpack.c.l.b16 %v1681
    %v1686 = vunpack.c.h.b16 %v1681
    %v1687 = vunpack.c.l.b16 %v1682
    %v1688 = vunpack.c.h.b16 %v1682
    %v1689 = vpack.c.b16 %v1685, %v1685
    %v1690 = vpack.c.b16 %v1686, %v1686
    %v1691 = vpack.c.b16 %v1687, %v1687
    %v1692 = vpack.c.b16 %v1688, %v1688
    %1697 = vst [vmem:[#allocation3 + $0x8] sm:$0xf] %v1689
    %1698 = vst [vmem:[#allocation3 + $0x10] sm:$0xf] %v1690
    %1699 = vst [vmem:[#allocation3 + $0x28] sm:$0xf] %v1691
    %1700 = vst [vmem:[#allocation3 + $0x30] sm:$0xf] %v1692
    %v1701 = vpack.c.bf16 %v1666, %v1665
    %v1702 = vpack.c.bf16 %v1668, %v1667
    %v1705 = vunpack.c.l.b16 %v1701
    %v1706 = vunpack.c.h.b16 %v1701
    %v1707 = vunpack.c.l.b16 %v1702
    %v1708 = vunpack.c.h.b16 %v1702
    %v1709 = vpack.c.b16 %v1705, %v1705
    %v1710 = vpack.c.b16 %v1706, %v1706
    %v1711 = vpack.c.b16 %v1707, %v1707
    %v1712 = vpack.c.b16 %v1708, %v1708
    %1717 = vst [vmem:[#allocation3 + $0xc] sm:$0xf] %v1709
    %1718 = vst [vmem:[#allocation3 + $0x14] sm:$0xf] %v1710
    %1719 = vst [vmem:[#allocation3 + $0x2c] sm:$0xf] %v1711
    %1720 = vst [vmem:[#allocation3 + $0x34] sm:$0xf] %v1712
    %v1721 = vld [vmem:[#allocation3 + $0x8] sm:$0xff]
    %v1722 = vld [vmem:[#allocation3 + $0x10] sm:$0xff]
    %v1723 = vld [vmem:[#allocation3 + $0x28] sm:$0xff]
    %v1724 = vld [vmem:[#allocation3 + $0x30] sm:$0xff]
    %v1725 = vld [vmem:[#allocation12] sm:$0xff]
    %v1726 = vld [vmem:[#allocation12 + $0x8] sm:$0xff]
    %v1727 = vld [vmem:[#allocation12 + $0x10] sm:$0xff]
    %v1728 = vld [vmem:[#allocation12 + $0x18] sm:$0xff]
    %v1729 = vld [vmem:[#allocation12 + $0x20] sm:$0xff]
    %v1730 = vld [vmem:[#allocation12 + $0x28] sm:$0xff]
    %v1731 = vld [vmem:[#allocation12 + $0x30] sm:$0xff]
    %v1732 = vld [vmem:[#allocation12 + $0x38] sm:$0xff]
    %v1733 = vld [vmem:[#allocation12 + $0x40] sm:$0xff]
    %v1734 = vld [vmem:[#allocation12 + $0x48] sm:$0xff]
    %v1735 = vld [vmem:[#allocation12 + $0x50] sm:$0xff]
    %v1736 = vld [vmem:[#allocation12 + $0x58] sm:$0xff]
    %v1737 = vld [vmem:[#allocation12 + $0x60] sm:$0xff]
    %v1738 = vld [vmem:[#allocation12 + $0x68] sm:$0xff]
    %v1739 = vld [vmem:[#allocation12 + $0x70] sm:$0xff]
    %v1740 = vld [vmem:[#allocation12 + $0x78] sm:$0xff]
    %v1741 = vld [vmem:[#allocation12 + $0x80] sm:$0xff]
    %v1742 = vld [vmem:[#allocation12 + $0x88] sm:$0xff]
    %v1743 = vld [vmem:[#allocation12 + $0x90] sm:$0xff]
    %v1744 = vld [vmem:[#allocation12 + $0x98] sm:$0xff]
    %v1745 = vld [vmem:[#allocation12 + $0xa0] sm:$0xff]
    %v1746 = vld [vmem:[#allocation12 + $0xa8] sm:$0xff]
    %v1747 = vld [vmem:[#allocation12 + $0xb0] sm:$0xff]
    %v1748 = vld [vmem:[#allocation12 + $0xb8] sm:$0xff]
    %v1749 = vld [vmem:[#allocation12 + $0xc0] sm:$0xff]
    %v1750 = vld [vmem:[#allocation12 + $0xc8] sm:$0xff]
    %v1751 = vld [vmem:[#allocation12 + $0xd0] sm:$0xff]
    %v1752 = vld [vmem:[#allocation12 + $0xd8] sm:$0xff]
    %v1753 = vld [vmem:[#allocation12 + $0xe0] sm:$0xff]
    %v1754 = vld [vmem:[#allocation12 + $0xe8] sm:$0xff]
    %v1755 = vld [vmem:[#allocation12 + $0xf0] sm:$0xff]
    %v1756 = vld [vmem:[#allocation12 + $0xf8] sm:$0xff]
    %v1761 = vunpack.c.l.b16 %v1721
    %v1762 = vunpack.c.h.b16 %v1721
    %v1763 = vunpack.c.l.b16 %v1722
    %v1764 = vunpack.c.h.b16 %v1722
    %v1765 = vunpack.c.l.b16 %v1723
    %v1766 = vunpack.c.h.b16 %v1723
    %v1767 = vunpack.c.l.b16 %v1724
    %v1768 = vunpack.c.h.b16 %v1724
    %v1769 = vpack.c.b16 %v1763, %v1761
    %v1770 = vpack.c.b16 %v1764, %v1762
    %v1771 = vpack.c.b16 %v1767, %v1765
    %v1772 = vpack.c.b16 %v1768, %v1766
    %v1809 = vunpack.c.l.b16 %v1725
    %v1810 = vunpack.c.h.b16 %v1725
    %v1811 = vunpack.c.l.b16 %v1726
    %v1812 = vunpack.c.h.b16 %v1726
    %v1813 = vunpack.c.l.b16 %v1727
    %v1814 = vunpack.c.h.b16 %v1727
    %v1815 = vunpack.c.l.b16 %v1728
    %v1816 = vunpack.c.h.b16 %v1728
    %v1817 = vunpack.c.l.b16 %v1729
    %v1818 = vunpack.c.h.b16 %v1729
    %v1819 = vunpack.c.l.b16 %v1730
    %v1820 = vunpack.c.h.b16 %v1730
    %v1821 = vunpack.c.l.b16 %v1731
    %v1822 = vunpack.c.h.b16 %v1731
    %v1823 = vunpack.c.l.b16 %v1732
    %v1824 = vunpack.c.h.b16 %v1732
    %v1825 = vunpack.c.l.b16 %v1733
    %v1826 = vunpack.c.h.b16 %v1733
    %v1827 = vunpack.c.l.b16 %v1734
    %v1828 = vunpack.c.h.b16 %v1734
    %v1829 = vunpack.c.l.b16 %v1735
    %v1830 = vunpack.c.h.b16 %v1735
    %v1831 = vunpack.c.l.b16 %v1736
    %v1832 = vunpack.c.h.b16 %v1736
    %v1833 = vunpack.c.l.b16 %v1737
    %v1834 = vunpack.c.h.b16 %v1737
    %v1835 = vunpack.c.l.b16 %v1738
    %v1836 = vunpack.c.h.b16 %v1738
    %v1837 = vunpack.c.l.b16 %v1739
    %v1838 = vunpack.c.h.b16 %v1739
    %v1839 = vunpack.c.l.b16 %v1740
    %v1840 = vunpack.c.h.b16 %v1740
    %v1841 = vunpack.c.l.b16 %v1741
    %v1842 = vunpack.c.h.b16 %v1741
    %v1843 = vunpack.c.l.b16 %v1742
    %v1844 = vunpack.c.h.b16 %v1742
    %v1845 = vunpack.c.l.b16 %v1743
    %v1846 = vunpack.c.h.b16 %v1743
    %v1847 = vunpack.c.l.b16 %v1744
    %v1848 = vunpack.c.h.b16 %v1744
    %v1849 = vunpack.c.l.b16 %v1745
    %v1850 = vunpack.c.h.b16 %v1745
    %v1851 = vunpack.c.l.b16 %v1746
    %v1852 = vunpack.c.h.b16 %v1746
    %v1853 = vunpack.c.l.b16 %v1747
    %v1854 = vunpack.c.h.b16 %v1747
    %v1855 = vunpack.c.l.b16 %v1748
    %v1856 = vunpack.c.h.b16 %v1748
    %v1857 = vunpack.c.l.b16 %v1749
    %v1858 = vunpack.c.h.b16 %v1749
    %v1859 = vunpack.c.l.b16 %v1750
    %v1860 = vunpack.c.h.b16 %v1750
    %v1861 = vunpack.c.l.b16 %v1751
    %v1862 = vunpack.c.h.b16 %v1751
    %v1863 = vunpack.c.l.b16 %v1752
    %v1864 = vunpack.c.h.b16 %v1752
    %v1865 = vunpack.c.l.b16 %v1753
    %v1866 = vunpack.c.h.b16 %v1753
    %v1867 = vunpack.c.l.b16 %v1754
    %v1868 = vunpack.c.h.b16 %v1754
    %v1869 = vunpack.c.l.b16 %v1755
    %v1870 = vunpack.c.h.b16 %v1755
    %v1871 = vunpack.c.l.b16 %v1756
    %v1872 = vunpack.c.h.b16 %v1756
    %v1873 = vpack.c.b16 %v1811, %v1809
    %v1874 = vpack.c.b16 %v1812, %v1810
    %v1875 = vpack.c.b16 %v1815, %v1813
    %v1876 = vpack.c.b16 %v1816, %v1814
    %v1877 = vpack.c.b16 %v1819, %v1817
    %v1878 = vpack.c.b16 %v1820, %v1818
    %v1879 = vpack.c.b16 %v1823, %v1821
    %v1880 = vpack.c.b16 %v1824, %v1822
    %v1881 = vpack.c.b16 %v1827, %v1825
    %v1882 = vpack.c.b16 %v1828, %v1826
    %v1883 = vpack.c.b16 %v1831, %v1829
    %v1884 = vpack.c.b16 %v1832, %v1830
    %v1885 = vpack.c.b16 %v1835, %v1833
    %v1886 = vpack.c.b16 %v1836, %v1834
    %v1887 = vpack.c.b16 %v1839, %v1837
    %v1888 = vpack.c.b16 %v1840, %v1838
    %v1889 = vpack.c.b16 %v1843, %v1841
    %v1890 = vpack.c.b16 %v1844, %v1842
    %v1891 = vpack.c.b16 %v1847, %v1845
    %v1892 = vpack.c.b16 %v1848, %v1846
    %v1893 = vpack.c.b16 %v1851, %v1849
    %v1894 = vpack.c.b16 %v1852, %v1850
    %v1895 = vpack.c.b16 %v1855, %v1853
    %v1896 = vpack.c.b16 %v1856, %v1854
    %v1897 = vpack.c.b16 %v1859, %v1857
    %v1898 = vpack.c.b16 %v1860, %v1858
    %v1899 = vpack.c.b16 %v1863, %v1861
    %v1900 = vpack.c.b16 %v1864, %v1862
    %v1901 = vpack.c.b16 %v1867, %v1865
    %v1902 = vpack.c.b16 %v1868, %v1866
    %v1903 = vpack.c.b16 %v1871, %v1869
    %v1904 = vpack.c.b16 %v1872, %v1870
    %1937 = vmatprep.subr.bf16.mxu0 %v1874
    %1938 = vmatpush1.bf16.msra.mxu0 %v1873
    %1939 = vmatprep.subr.bf16.mxu0 %v1876
    %1940 = vmatpush1.bf16.msra.mxu0 %v1875
    %1941 = vmatprep.subr.bf16.mxu0 %v1878
    %1942 = vmatpush1.bf16.msra.mxu0 %v1877
    %1943 = vmatprep.subr.bf16.mxu0 %v1880
    %1944 = vmatpush1.bf16.msra.mxu0 %v1879
    %1945 = vmatprep.subr.bf16.mxu0 %v1882
    %1946 = vmatpush1.bf16.msra.mxu0 %v1881
    %1947 = vmatprep.subr.bf16.mxu0 %v1884
    %1948 = vmatpush1.bf16.msra.mxu0 %v1883
    %1949 = vmatprep.subr.bf16.mxu0 %v1886
    %1950 = vmatpush1.bf16.msra.mxu0 %v1885
    %1951 = vmatprep.subr.bf16.mxu0 %v1888
    %1952 = vmatpush1.bf16.msra.mxu0 %v1887
    %1953 = vmatprep.subr.bf16.mxu0 %v1890
    %1954 = vmatpush1.bf16.msra.mxu0 %v1889
    %1955 = vmatprep.subr.bf16.mxu0 %v1892
    %1956 = vmatpush1.bf16.msra.mxu0 %v1891
    %1957 = vmatprep.subr.bf16.mxu0 %v1894
    %1958 = vmatpush1.bf16.msra.mxu0 %v1893
    %1959 = vmatprep.subr.bf16.mxu0 %v1896
    %1960 = vmatpush1.bf16.msra.mxu0 %v1895
    %1961 = vmatprep.subr.bf16.mxu0 %v1898
    %1962 = vmatpush1.bf16.msra.mxu0 %v1897
    %1963 = vmatprep.subr.bf16.mxu0 %v1900
    %1964 = vmatpush1.bf16.msra.mxu0 %v1899
    %1965 = vmatprep.subr.bf16.mxu0 %v1902
    %1966 = vmatpush1.bf16.msra.mxu0 %v1901
    %1967 = vmatprep.subr.bf16.mxu0 %v1904
    %1968 = vmatpush1.bf16.msra.mxu0 %v1903
    %1969 = vmatprep.mubr.bf16.mxu0 %v1770
    %1970 = vmatmul.mubr.bf16.gmra.mrb[0].mxu0 %v1769
    %v1971 = vpop.f32.mrb[0].mxu0
    %v1972 = vadd.f32 0.0, %v1971
    %v1973 = vpop.f32.mrb[0].mxu0
    %v1974 = vadd.f32 0.0, %v1973
    %v1975 = vpop.f32.mrb[0].mxu0
    %v1976 = vadd.f32 0.0, %v1975
    %v1977 = vpop.f32.mrb[0].mxu0
    %v1978 = vadd.f32 0.0, %v1977
    %1979 = vmatprep.mubr.bf16.mxu0 %v1772
    %1980 = vmatmul.mubr.bf16.gmra.mrb[0].mxu0 %v1771
    %v1981 = vpop.f32.mrb[0].mxu0
    %v1982 = vadd.f32 0.0, %v1981
    %v1983 = vpop.f32.mrb[0].mxu0
    %v1984 = vadd.f32 0.0, %v1983
    %v1985 = vpop.f32.mrb[0].mxu0
    %v1986 = vadd.f32 0.0, %v1985
    %v1987 = vpop.f32.mrb[0].mxu0
    %v1988 = vadd.f32 0.0, %v1987
    %1989 = vdwg.mxu0
    %v1990 = vld [vmem:[#allocation3 + $0x4] sm:$0x8]
    %v1991 = vld [vmem:[#allocation3 + $0xc] sm:$0xf]
    %v1992 = vld [vmem:[#allocation3 + $0x14] sm:$0xf]
    %v1993 = vld [vmem:[#allocation3 + $0x24] sm:$0x8]
    %v1994 = vld [vmem:[#allocation3 + $0x2c] sm:$0xf]
    %v1995 = vld [vmem:[#allocation3 + $0x34] sm:$0xf]
    %v1997 = vshrl.u32 %v1990, 16
    %v1999 = vrot.slane %v1997, 7
    %v2000 = vrot.slane %v1999, 4
    %v2002 = vshrl.u32 %v1991, 16
    %v2004 = vrot.slane %v2002, 7
    %v2005 = vshll.u32 %v1991, 16
    %v2007 = vor.u32 %v2004, %v2005
    %v2008 = vsel %vm908, %v2000, %v2007
    %v2009 = vrot.slane %v2004, 4
    %v2011 = vshrl.u32 %v1992, 16
    %v2013 = vrot.slane %v2011, 7
    %v2014 = vshll.u32 %v1992, 16
    %v2016 = vor.u32 %v2013, %v2014
    %v2017 = vsel %vm908, %v2009, %v2016
    %v2019 = vshrl.u32 %v1993, 16
    %v2021 = vrot.slane %v2019, 7
    %v2022 = vrot.slane %v2021, 4
    %v2024 = vshrl.u32 %v1994, 16
    %v2026 = vrot.slane %v2024, 7
    %v2027 = vshll.u32 %v1994, 16
    %v2029 = vor.u32 %v2026, %v2027
    %v2030 = vsel %vm908, %v2022, %v2029
    %v2031 = vrot.slane %v2026, 4
    %v2033 = vshrl.u32 %v1995, 16
    %v2035 = vrot.slane %v2033, 7
    %v2036 = vshll.u32 %v1995, 16
    %v2038 = vor.u32 %v2035, %v2036
    %v2039 = vsel %vm908, %v2031, %v2038
    %v2040 = vld [vmem:[#allocation13] sm:$0xf]
    %v2041 = vld [vmem:[#allocation13 + $0x4] sm:$0xf]
    %v2042 = vld [vmem:[#allocation13 + $0x8] sm:$0xf]
    %v2043 = vld [vmem:[#allocation13 + $0xc] sm:$0xf]
    %v2044 = vld [vmem:[#allocation13 + $0x10] sm:$0xf]
    %v2045 = vld [vmem:[#allocation13 + $0x14] sm:$0xf]
    %v2046 = vld [vmem:[#allocation13 + $0x18] sm:$0xf]
    %v2047 = vld [vmem:[#allocation13 + $0x1c] sm:$0xf]
    %v2048 = vld [vmem:[#allocation13 + $0x20] sm:$0xf]
    %v2049 = vld [vmem:[#allocation13 + $0x24] sm:$0xf]
    %v2050 = vld [vmem:[#allocation13 + $0x28] sm:$0xf]
    %v2051 = vld [vmem:[#allocation13 + $0x2c] sm:$0xf]
    %v2052 = vld [vmem:[#allocation13 + $0x30] sm:$0xf]
    %v2053 = vld [vmem:[#allocation13 + $0x34] sm:$0xf]
    %v2054 = vld [vmem:[#allocation13 + $0x38] sm:$0xf]
    %v2055 = vld [vmem:[#allocation13 + $0x3c] sm:$0xf]
    %v2056 = vunpack.c.l.b16 %v2008
    %v2057 = vunpack.c.l.b16 %v2017
    %v2058 = vunpack.c.l.b16 %v2030
    %v2059 = vunpack.c.l.b16 %v2039
    %v2060 = vpack.c.b16 %v2057, %v2056
    %v2061 = vpack.c.b16 %v2059, %v2058
    %v2080 = vunpack.c.l.b16 %v2040
    %v2081 = vunpack.c.l.b16 %v2041
    %v2082 = vunpack.c.l.b16 %v2042
    %v2083 = vunpack.c.l.b16 %v2043
    %v2084 = vunpack.c.l.b16 %v2044
    %v2085 = vunpack.c.l.b16 %v2045
    %v2086 = vunpack.c.l.b16 %v2046
    %v2087 = vunpack.c.l.b16 %v2047
    %v2088 = vunpack.c.l.b16 %v2048
    %v2089 = vunpack.c.l.b16 %v2049
    %v2090 = vunpack.c.l.b16 %v2050
    %v2091 = vunpack.c.l.b16 %v2051
    %v2092 = vunpack.c.l.b16 %v2052
    %v2093 = vunpack.c.l.b16 %v2053
    %v2094 = vunpack.c.l.b16 %v2054
    %v2095 = vunpack.c.l.b16 %v2055
    %v2096 = vpack.c.b16 %v2081, %v2080
    %v2097 = vpack.c.b16 %v2083, %v2082
    %v2098 = vpack.c.b16 %v2085, %v2084
    %v2099 = vpack.c.b16 %v2087, %v2086
    %v2100 = vpack.c.b16 %v2089, %v2088
    %v2101 = vpack.c.b16 %v2091, %v2090
    %v2102 = vpack.c.b16 %v2093, %v2092
    %v2103 = vpack.c.b16 %v2095, %v2094
    %2112 = vmatprep.subr.bf16.mxu0 0
    %2113 = vmatpush1.bf16.msra.mxu0 %v2096
    %2114 = vmatprep.subr.bf16.mxu0 0
    %2115 = vmatpush1.bf16.msra.mxu0 %v2097
    %2116 = vmatprep.subr.bf16.mxu0 0
    %2117 = vmatpush1.bf16.msra.mxu0 %v2098
    %2118 = vmatprep.subr.bf16.mxu0 0
    %2119 = vmatpush1.bf16.msra.mxu0 %v2099
    %2120 = vmatprep.subr.bf16.mxu0 0
    %2121 = vmatpush1.bf16.msra.mxu0 %v2100
    %2122 = vmatprep.subr.bf16.mxu0 0
    %2123 = vmatpush1.bf16.msra.mxu0 %v2101
    %2124 = vmatprep.subr.bf16.mxu0 0
    %2125 = vmatpush1.bf16.msra.mxu0 %v2102
    %2126 = vmatprep.subr.bf16.mxu0 0
    %2127 = vmatpush1.bf16.msra.mxu0 %v2103
    %2128 = vmatprep.subr.bf16.mxu0 0
    %2129 = vmatpush1.bf16.msra.mxu0 0
    %2130 = vmatprep.subr.bf16.mxu0 0
    %2131 = vmatpush1.bf16.msra.mxu0 0
    %2132 = vmatprep.subr.bf16.mxu0 0
    %2133 = vmatpush1.bf16.msra.mxu0 0
    %2134 = vmatprep.subr.bf16.mxu0 0
    %2135 = vmatpush1.bf16.msra.mxu0 0
    %2136 = vmatprep.subr.bf16.mxu0 0
    %2137 = vmatpush1.bf16.msra.mxu0 0
    %2138 = vmatprep.subr.bf16.mxu0 0
    %2139 = vmatpush1.bf16.msra.mxu0 0
    %2140 = vmatprep.subr.bf16.mxu0 0
    %2141 = vmatpush1.bf16.msra.mxu0 0
    %2142 = vmatprep.subr.bf16.mxu0 0
    %2143 = vmatpush1.bf16.msra.mxu0 0
    %2144 = vmatprep.mubr.bf16.mxu0 0
    %2145 = vmatmul.mubr.bf16.gmra.mrb[0].mxu0 %v2060
    %v2146 = vpop.f32.mrb[0].mxu0
    %v2147 = vadd.f32 0.0, %v2146
    %v2148 = vpop.f32.mrb[0].mxu0
    %v2149 = vpop.f32.mrb[0].mxu0
    %v2150 = vadd.f32 0.0, %v2149
    %v2151 = vpop.f32.mrb[0].mxu0
    %2152 = vmatprep.mubr.bf16.mxu0 0
    %2153 = vmatmul.mubr.bf16.gmra.mrb[0].mxu0 %v2061
    %v2154 = vpop.f32.mrb[0].mxu0
    %v2155 = vadd.f32 0.0, %v2154
    %v2156 = vpop.f32.mrb[0].mxu0
    %v2157 = vpop.f32.mrb[0].mxu0
    %v2158 = vadd.f32 0.0, %v2157
    %v2159 = vpop.f32.mrb[0].mxu0
    %2160 = vdwg.mxu0
    %v2161 = vadd.f32 %v1972, %v2147
    %v2162 = vadd.f32 %v1976, %v2150
    %v2163 = vadd.f32 %v1982, %v2155
    %v2164 = vadd.f32 %v1986, %v2158
    %v2165 = vld [vmem:[%s8] sm:$0x1]
    %v2167 = vlaneseq
    %v2168 = vshrl.u32 %v2167, 7
    %v2169 = vsub.s32 0, %v2168
    %v2170 = vrot.slane %v2165, %v2169
    %v2172 = vadd.f32 %v2161, %v2170
    %v2173 = vadd.f32 %v2162, %v2170
    %v2174 = vadd.f32 %v2163, %v2170
    %v2175 = vadd.f32 %v2164, %v2170
    %v2176 = vld [vmem:[#allocation3 + $0x8] sm:$0xf]
    %v2177 = vld [vmem:[#allocation3 + $0x10] sm:$0xf]
    %v2178 = vld [vmem:[#allocation3 + $0x18] sm:$0x1]
    %v2179 = vld [vmem:[#allocation3 + $0x28] sm:$0xf]
    %v2180 = vld [vmem:[#allocation3 + $0x30] sm:$0xf]
    %v2181 = vld [vmem:[#allocation3 + $0x38] sm:$0x1]
    %v2183 = vshrl.u32 %v2176, 16
    %v2185 = vrot.slane %v2183, 4
    %v2186 = vshll.u32 %v2176, 16
    %v2188 = vrot.slane %v2186, 5
    %v2189 = vor.u32 %v2185, %v2188
    %v2190 = vrot.slane %v2189, 4
    %v2192 = vshll.u32 %v2177, 16
    %v2194 = vrot.slane %v2192, 5
    %v2195 = vsel %vm1158, %v2190, %v2194
    %v2196 = vshrl.u32 %v2177, 16
    %v2198 = vrot.slane %v2196, 4
    %v2199 = vor.u32 %v2198, %v2194
    %v2200 = vrot.slane %v2199, 4
    %v2202 = vshll.u32 %v2178, 16
    %v2204 = vrot.slane %v2202, 5
    %v2205 = vsel %vm1158, %v2200, %v2204
    %v2207 = vshrl.u32 %v2179, 16
    %v2209 = vrot.slane %v2207, 4
    %v2210 = vshll.u32 %v2179, 16
    %v2212 = vrot.slane %v2210, 5
    %v2213 = vor.u32 %v2209, %v2212
    %v2214 = vrot.slane %v2213, 4
    %v2216 = vshll.u32 %v2180, 16
    %v2218 = vrot.slane %v2216, 5
    %v2219 = vsel %vm1158, %v2214, %v2218
    %v2220 = vshrl.u32 %v2180, 16
    %v2222 = vrot.slane %v2220, 4
    %v2223 = vor.u32 %v2222, %v2218
    %v2224 = vrot.slane %v2223, 4
    %v2226 = vshll.u32 %v2181, 16
    %v2228 = vrot.slane %v2226, 5
    %v2229 = vsel %vm1158, %v2224, %v2228
    %s2230 = scalar_lea.vmem [#allocation13], 64
    %v2231 = vld [vmem:[%s2230] sm:$0xf]
    %v2232 = vld [vmem:[%s2230 + $0x4] sm:$0xf]
    %v2233 = vld [vmem:[%s2230 + $0x8] sm:$0xf]
    %v2234 = vld [vmem:[%s2230 + $0xc] sm:$0xf]
    %v2235 = vld [vmem:[%s2230 + $0x10] sm:$0xf]
    %v2236 = vld [vmem:[%s2230 + $0x14] sm:$0xf]
    %v2237 = vld [vmem:[%s2230 + $0x18] sm:$0xf]
    %v2238 = vld [vmem:[%s2230 + $0x1c] sm:$0xf]
    %v2239 = vld [vmem:[%s2230 + $0x20] sm:$0xf]
    %v2240 = vld [vmem:[%s2230 + $0x24] sm:$0xf]
    %v2241 = vld [vmem:[%s2230 + $0x28] sm:$0xf]
    %v2242 = vld [vmem:[%s2230 + $0x2c] sm:$0xf]
    %v2243 = vld [vmem:[%s2230 + $0x30] sm:$0xf]
    %v2244 = vld [vmem:[%s2230 + $0x34] sm:$0xf]
    %v2245 = vld [vmem:[%s2230 + $0x38] sm:$0xf]
    %v2246 = vld [vmem:[%s2230 + $0x3c] sm:$0xf]
    %v2247 = vunpack.c.l.b16 %v2195
    %v2248 = vunpack.c.l.b16 %v2205
    %v2249 = vunpack.c.l.b16 %v2219
    %v2250 = vunpack.c.l.b16 %v2229
    %v2251 = vpack.c.b16 %v2248, %v2247
    %v2252 = vpack.c.b16 %v2250, %v2249
    %v2271 = vunpack.c.l.b16 %v2231
    %v2272 = vunpack.c.l.b16 %v2232
    %v2273 = vunpack.c.l.b16 %v2233
    %v2274 = vunpack.c.l.b16 %v2234
    %v2275 = vunpack.c.l.b16 %v2235
    %v2276 = vunpack.c.l.b16 %v2236
    %v2277 = vunpack.c.l.b16 %v2237
    %v2278 = vunpack.c.l.b16 %v2238
    %v2279 = vunpack.c.l.b16 %v2239
    %v2280 = vunpack.c.l.b16 %v2240
    %v2281 = vunpack.c.l.b16 %v2241
    %v2282 = vunpack.c.l.b16 %v2242
    %v2283 = vunpack.c.l.b16 %v2243
    %v2284 = vunpack.c.l.b16 %v2244
    %v2285 = vunpack.c.l.b16 %v2245
    %v2286 = vunpack.c.l.b16 %v2246
    %v2287 = vpack.c.b16 %v2272, %v2271
    %v2288 = vpack.c.b16 %v2274, %v2273
    %v2289 = vpack.c.b16 %v2276, %v2275
    %v2290 = vpack.c.b16 %v2278, %v2277
    %v2291 = vpack.c.b16 %v2280, %v2279
    %v2292 = vpack.c.b16 %v2282, %v2281
    %v2293 = vpack.c.b16 %v2284, %v2283
    %v2294 = vpack.c.b16 %v2286, %v2285
    %2303 = vmatprep.subr.bf16.mxu0 0
    %2304 = vmatpush1.bf16.msra.mxu0 %v2287
    %2305 = vmatprep.subr.bf16.mxu0 0
    %2306 = vmatpush1.bf16.msra.mxu0 %v2288
    %2307 = vmatprep.subr.bf16.mxu0 0
    %2308 = vmatpush1.bf16.msra.mxu0 %v2289
    %2309 = vmatprep.subr.bf16.mxu0 0
    %2310 = vmatpush1.bf16.msra.mxu0 %v2290
    %2311 = vmatprep.subr.bf16.mxu0 0
    %2312 = vmatpush1.bf16.msra.mxu0 %v2291
    %2313 = vmatprep.subr.bf16.mxu0 0
    %2314 = vmatpush1.bf16.msra.mxu0 %v2292
    %2315 = vmatprep.subr.bf16.mxu0 0
    %2316 = vmatpush1.bf16.msra.mxu0 %v2293
    %2317 = vmatprep.subr.bf16.mxu0 0
    %2318 = vmatpush1.bf16.msra.mxu0 %v2294
    %2319 = vmatprep.subr.bf16.mxu0 0
    %2320 = vmatpush1.bf16.msra.mxu0 0
    %2321 = vmatprep.subr.bf16.mxu0 0
    %2322 = vmatpush1.bf16.msra.mxu0 0
    %2323 = vmatprep.subr.bf16.mxu0 0
    %2324 = vmatpush1.bf16.msra.mxu0 0
    %2325 = vmatprep.subr.bf16.mxu0 0
    %2326 = vmatpush1.bf16.msra.mxu0 0
    %2327 = vmatprep.subr.bf16.mxu0 0
    %2328 = vmatpush1.bf16.msra.mxu0 0
    %2329 = vmatprep.subr.bf16.mxu0 0
    %2330 = vmatpush1.bf16.msra.mxu0 0
    %2331 = vmatprep.subr.bf16.mxu0 0
    %2332 = vmatpush1.bf16.msra.mxu0 0
    %2333 = vmatprep.subr.bf16.mxu0 0
    %2334 = vmatpush1.bf16.msra.mxu0 0
    %2335 = vmatprep.mubr.bf16.mxu0 0
    %2336 = vmatmul.mubr.bf16.gmra.mrb[0].mxu0 %v2251
    %v2337 = vpop.f32.mrb[0].mxu0
    %v2338 = vadd.f32 0.0, %v2337
    %v2339 = vpop.f32.mrb[0].mxu0
    %v2340 = vpop.f32.mrb[0].mxu0
    %v2341 = vadd.f32 0.0, %v2340
    %v2342 = vpop.f32.mrb[0].mxu0
    %2343 = vmatprep.mubr.bf16.mxu0 0
    %2344 = vmatmul.mubr.bf16.gmra.mrb[0].mxu0 %v2252
    %v2345 = vpop.f32.mrb[0].mxu0
    %v2346 = vadd.f32 0.0, %v2345
    %v2347 = vpop.f32.mrb[0].mxu0
    %v2348 = vpop.f32.mrb[0].mxu0
    %v2349 = vadd.f32 0.0, %v2348
    %v2350 = vpop.f32.mrb[0].mxu0
    %2351 = vdwg.mxu0
    %v2352 = vadd.f32 %v1974, %v2338
    %v2353 = vadd.f32 %v1978, %v2341
    %v2354 = vadd.f32 %v1984, %v2346
    %v2355 = vadd.f32 %v1988, %v2349
    %v2356 = vadd.f32 %v2352, %v2170
    %v2357 = vadd.f32 %v2353, %v2170
    %v2358 = vadd.f32 %v2354, %v2170
    %v2359 = vadd.f32 %v2355, %v2170
    %vm2360 = vcmp.ge.f32.partialorder %v2172, 0.0
    %vm2361 = vcmp.ge.f32.partialorder %v2173, 0.0
    %vm2362 = vcmp.ge.f32.partialorder %v2174, 0.0
    %vm2363 = vcmp.ge.f32.partialorder %v2175, 0.0
    %v2364 = vmul.f32 %v2172, 0.01
    %v2365 = vmul.f32 %v2173, 0.01
    %v2366 = vmul.f32 %v2174, 0.01
    %v2367 = vmul.f32 %v2175, 0.01
    %v2368 = vsel %vm2360, %v2172, %v2364
    %v2369 = vsel %vm2361, %v2173, %v2365
    %v2370 = vsel %vm2362, %v2174, %v2366
    %v2371 = vsel %vm2363, %v2175, %v2367
    %vm2372 = vcmp.ge.f32.partialorder %v2356, 0.0
    %vm2373 = vcmp.ge.f32.partialorder %v2357, 0.0
    %vm2374 = vcmp.ge.f32.partialorder %v2358, 0.0
    %vm2375 = vcmp.ge.f32.partialorder %v2359, 0.0
    %v2376 = vmul.f32 %v2356, 0.01
    %v2377 = vmul.f32 %v2357, 0.01
    %v2378 = vmul.f32 %v2358, 0.01
    %v2379 = vmul.f32 %v2359, 0.01
    %v2380 = vsel %vm2372, %v2356, %v2376
    %v2381 = vsel %vm2373, %v2357, %v2377
    %v2382 = vsel %vm2374, %v2358, %v2378
    %v2383 = vsel %vm2375, %v2359, %v2379
    %v2384 = vld [vmem:[%s11] sm:$0x1]
    %v2385 = vld [vmem:[%s12] sm:$0x1]
    %v2386 = vadd.f32 %v2368, %v2369
    %v2387 = vadd.f32 %v2386, %v2370
    %v2388 = vadd.f32 %v2387, %v2371
    %v2389 = vrot.slane %v2388, 4
    %v2390 = vadd.f32 %v2388, %v2389
    %v2391 = vrot.slane %v2390, 2
    %v2392 = vadd.f32 %v2390, %v2391
    %v2393 = vrot.slane %v2392, 1
    %v2394 = vadd.f32 %v2392, %v2393
    %v2395 = vadd.f32 %v2380, %v2381
    %v2396 = vadd.f32 %v2395, %v2382
    %v2397 = vadd.f32 %v2396, %v2383
    %v2398 = vrot.slane %v2397, 4
    %v2399 = vadd.f32 %v2397, %v2398
    %v2400 = vrot.slane %v2399, 2
    %v2401 = vadd.f32 %v2399, %v2400
    %v2402 = vrot.slane %v2401, 1
    %v2403 = vadd.f32 %v2401, %v2402
    %v2404 = vadd.f32 %v2394, %v2403
    %2405 = vmatprep.subr.mxu0 0.0
    %2406 = vmatpush1.msra.mxu0 %v351
    %2407 = vmatprep.subr.mxu0 0.0
    %2408 = vmatpush1.msra.mxu0 %v352
    %2409 = vmatprep.subr.mxu0 0.0
    %2410 = vmatpush1.msra.mxu0 %v353
    %2411 = vmatprep.subr.mxu0 0.0
    %2412 = vmatpush1.msra.mxu0 %v354
    %2413 = vmatprep.subr.mxu0 0.0
    %2414 = vmatpush1.msra.mxu0 %v355
    %2415 = vmatprep.subr.mxu0 0.0
    %2416 = vmatpush1.msra.mxu0 %v356
    %2417 = vmatprep.subr.mxu0 0.0
    %2418 = vmatpush1.msra.mxu0 %v357
    %2419 = vmatprep.subr.mxu0 0.0
    %2420 = vmatpush1.msra.mxu0 %v358
    %2421 = vmatprep.subr.mxu0 0.0
    %2422 = vmatpush1.msra.mxu0 %v359
    %2423 = vmatprep.subr.mxu0 0.0
    %2424 = vmatpush1.msra.mxu0 %v360
    %2425 = vmatprep.subr.mxu0 0.0
    %2426 = vmatpush1.msra.mxu0 %v361
    %2427 = vmatprep.subr.mxu0 0.0
    %2428 = vmatpush1.msra.mxu0 %v362
    %2429 = vmatprep.subr.mxu0 0.0
    %2430 = vmatpush1.msra.mxu0 %v363
    %2431 = vmatprep.subr.mxu0 0.0
    %2432 = vmatpush1.msra.mxu0 %v364
    %2433 = vmatprep.subr.mxu0 0.0
    %2434 = vmatpush1.msra.mxu0 %v365
    %2435 = vmatprep.subr.mxu0 0.0
    %2436 = vmatpush1.msra.mxu0 %v366
    %2437 = vmatprep.subr.mxu0 0.0
    %2438 = vmatpush1.msra.mxu0 0.0
    %2439 = vmatprep.subr.mxu0 0.0
    %2440 = vmatpush1.msra.mxu0 0.0
    %2441 = vmatprep.subr.mxu0 0.0
    %2442 = vmatpush1.msra.mxu0 0.0
    %2443 = vmatprep.subr.mxu0 0.0
    %2444 = vmatpush1.msra.mxu0 0.0
    %2445 = vmatprep.subr.mxu0 0.0
    %2446 = vmatpush1.msra.mxu0 0.0
    %2447 = vmatprep.subr.mxu0 0.0
    %2448 = vmatpush1.msra.mxu0 0.0
    %2449 = vmatprep.subr.mxu0 0.0
    %2450 = vmatpush1.msra.mxu0 0.0
    %2451 = vmatprep.subr.mxu0 0.0
    %2452 = vmatpush1.msra.mxu0 0.0
    %2453 = vmatprep.subr.mxu0 0.0
    %2454 = vmatpush1.msra.mxu0 0.0
    %2455 = vmatprep.subr.mxu0 0.0
    %2456 = vmatpush1.msra.mxu0 0.0
    %2457 = vmatprep.subr.mxu0 0.0
    %2458 = vmatpush1.msra.mxu0 0.0
    %2459 = vmatprep.subr.mxu0 0.0
    %2460 = vmatpush1.msra.mxu0 0.0
    %2461 = vmatprep.subr.mxu0 0.0
    %2462 = vmatpush1.msra.mxu0 0.0
    %2463 = vmatprep.subr.mxu0 0.0
    %2464 = vmatpush1.msra.mxu0 0.0
    %2465 = vmatprep.subr.mxu0 0.0
    %2466 = vmatpush1.msra.mxu0 0.0
    %2467 = vmatprep.subr.mxu0 0.0
    %2468 = vmatpush1.msra.mxu0 0.0
    %2469 = vmatprep.mubr.f32.mxu0 0.0
    %2470 = vmatmul.mubr.f32.gmra.mrb[0].mxu0 %v2404
    %v2471 = vpop.f32.mrb[0].mxu0
    %v2472 = vadd.f32 0.0, %v2471
    %v2473 = vpop.f32.mrb[0].mxu0
    %2474 = vdwg.mxu0
    %v2475 = vlaneseq
    %v2476 = vshrl.u32 %v2475, 7
    %v2477 = vsub.s32 0, %v2476
    %v2478 = vrot.slane %v2472, %v2477
    %v2479 = vsub.f32 %v2368, %v2478
    %v2480 = vsub.f32 %v2369, %v2478
    %v2481 = vsub.f32 %v2370, %v2478
    %v2482 = vsub.f32 %v2371, %v2478
    %v2483 = vsub.f32 %v2380, %v2478
    %v2484 = vsub.f32 %v2381, %v2478
    %v2485 = vsub.f32 %v2382, %v2478
    %v2486 = vsub.f32 %v2383, %v2478
    %v2487 = vmul.f32 %v2479, %v2479
    %v2488 = vmul.f32 %v2480, %v2480
    %v2489 = vmul.f32 %v2481, %v2481
    %v2490 = vmul.f32 %v2482, %v2482
    %v2491 = vadd.f32 %v2487, %v2488
    %v2492 = vadd.f32 %v2491, %v2489
    %v2493 = vadd.f32 %v2492, %v2490
    %v2494 = vrot.slane %v2493, 4
    %v2495 = vadd.f32 %v2493, %v2494
    %v2496 = vrot.slane %v2495, 2
    %v2497 = vadd.f32 %v2495, %v2496
    %v2498 = vrot.slane %v2497, 1
    %v2499 = vadd.f32 %v2497, %v2498
    %v2500 = vmul.f32 %v2483, %v2483
    %v2501 = vmul.f32 %v2484, %v2484
    %v2502 = vmul.f32 %v2485, %v2485
    %v2503 = vmul.f32 %v2486, %v2486
    %v2504 = vadd.f32 %v2500, %v2501
    %v2505 = vadd.f32 %v2504, %v2502
    %v2506 = vadd.f32 %v2505, %v2503
    %v2507 = vrot.slane %v2506, 4
    %v2508 = vadd.f32 %v2506, %v2507
    %v2509 = vrot.slane %v2508, 2
    %v2510 = vadd.f32 %v2508, %v2509
    %v2511 = vrot.slane %v2510, 1
    %v2512 = vadd.f32 %v2510, %v2511
    %v2513 = vadd.f32 %v2499, %v2512
    %2514 = vmatprep.subr.mxu0 0.0
    %2515 = vmatpush1.msra.mxu0 %v351
    %2516 = vmatprep.subr.mxu0 0.0
    %2517 = vmatpush1.msra.mxu0 %v352
    %2518 = vmatprep.subr.mxu0 0.0
    %2519 = vmatpush1.msra.mxu0 %v353
    %2520 = vmatprep.subr.mxu0 0.0
    %2521 = vmatpush1.msra.mxu0 %v354
    %2522 = vmatprep.subr.mxu0 0.0
    %2523 = vmatpush1.msra.mxu0 %v355
    %2524 = vmatprep.subr.mxu0 0.0
    %2525 = vmatpush1.msra.mxu0 %v356
    %2526 = vmatprep.subr.mxu0 0.0
    %2527 = vmatpush1.msra.mxu0 %v357
    %2528 = vmatprep.subr.mxu0 0.0
    %2529 = vmatpush1.msra.mxu0 %v358
    %2530 = vmatprep.subr.mxu0 0.0
    %2531 = vmatpush1.msra.mxu0 %v359
    %2532 = vmatprep.subr.mxu0 0.0
    %2533 = vmatpush1.msra.mxu0 %v360
    %2534 = vmatprep.subr.mxu0 0.0
    %2535 = vmatpush1.msra.mxu0 %v361
    %2536 = vmatprep.subr.mxu0 0.0
    %2537 = vmatpush1.msra.mxu0 %v362
    %2538 = vmatprep.subr.mxu0 0.0
    %2539 = vmatpush1.msra.mxu0 %v363
    %2540 = vmatprep.subr.mxu0 0.0
    %2541 = vmatpush1.msra.mxu0 %v364
    %2542 = vmatprep.subr.mxu0 0.0
    %2543 = vmatpush1.msra.mxu0 %v365
    %2544 = vmatprep.subr.mxu0 0.0
    %2545 = vmatpush1.msra.mxu0 %v366
    %2546 = vmatprep.subr.mxu0 0.0
    %2547 = vmatpush1.msra.mxu0 0.0
    %2548 = vmatprep.subr.mxu0 0.0
    %2549 = vmatpush1.msra.mxu0 0.0
    %2550 = vmatprep.subr.mxu0 0.0
    %2551 = vmatpush1.msra.mxu0 0.0
    %2552 = vmatprep.subr.mxu0 0.0
    %2553 = vmatpush1.msra.mxu0 0.0
    %2554 = vmatprep.subr.mxu0 0.0
    %2555 = vmatpush1.msra.mxu0 0.0
    %2556 = vmatprep.subr.mxu0 0.0
    %2557 = vmatpush1.msra.mxu0 0.0
    %2558 = vmatprep.subr.mxu0 0.0
    %2559 = vmatpush1.msra.mxu0 0.0
    %2560 = vmatprep.subr.mxu0 0.0
    %2561 = vmatpush1.msra.mxu0 0.0
    %2562 = vmatprep.subr.mxu0 0.0
    %2563 = vmatpush1.msra.mxu0 0.0
    %2564 = vmatprep.subr.mxu0 0.0
    %2565 = vmatpush1.msra.mxu0 0.0
    %2566 = vmatprep.subr.mxu0 0.0
    %2567 = vmatpush1.msra.mxu0 0.0
    %2568 = vmatprep.subr.mxu0 0.0
    %2569 = vmatpush1.msra.mxu0 0.0
    %2570 = vmatprep.subr.mxu0 0.0
    %2571 = vmatpush1.msra.mxu0 0.0
    %2572 = vmatprep.subr.mxu0 0.0
    %2573 = vmatpush1.msra.mxu0 0.0
    %2574 = vmatprep.subr.mxu0 0.0
    %2575 = vmatpush1.msra.mxu0 0.0
    %2576 = vmatprep.subr.mxu0 0.0
    %2577 = vmatpush1.msra.mxu0 0.0
    %2578 = vmatprep.mubr.f32.mxu0 0.0
    %2579 = vmatmul.mubr.f32.gmra.mrb[0].mxu0 %v2513
    %v2580 = vpop.f32.mrb[0].mxu0
    %v2581 = vadd.f32 1e-05, %v2580
    %v2582 = vpop.f32.mrb[0].mxu0
    %2583 = vdwg.mxu0
    %v2584 = vrsqrt.pop %v2581
    %v2585 = vmul.f32 %v2584, %v2384
    %v2586 = vlaneseq
    %v2587 = vshrl.u32 %v2586, 7
    %v2588 = vsub.s32 0, %v2587
    %v2589 = vrot.slane %v2585, %v2588
    %v2590 = vmul.f32 %v2479, %v2589
    %v2591 = vmul.f32 %v2480, %v2589
    %v2592 = vmul.f32 %v2481, %v2589
    %v2593 = vmul.f32 %v2482, %v2589
    %v2595 = vlaneseq
    %v2596 = vshrl.u32 %v2595, 7
    %v2597 = vsub.s32 0, %v2596
    %v2598 = vrot.slane %v2385, %v2597
    %v2600 = vadd.f32 %v2590, %v2598
    %v2601 = vadd.f32 %v2591, %v2598
    %v2602 = vadd.f32 %v2592, %v2598
    %v2603 = vadd.f32 %v2593, %v2598
    %v2604 = vmul.f32 %v2483, %v2589
    %v2605 = vmul.f32 %v2484, %v2589
    %v2606 = vmul.f32 %v2485, %v2589
    %v2607 = vmul.f32 %v2486, %v2589
    %v2608 = vadd.f32 %v2604, %v2598
    %v2609 = vadd.f32 %v2605, %v2598
    %v2610 = vadd.f32 %v2606, %v2598
    %v2611 = vadd.f32 %v2607, %v2598
    %2612 = vst [vmem:[#allocation19] sm:$0xff] %v2600
    %2613 = vst [vmem:[#allocation19 + $0x10] sm:$0xff] %v2601
    %2614 = vst [vmem:[#allocation19 + $0x20] sm:$0xff] %v2602
    %2615 = vst [vmem:[#allocation19 + $0x30] sm:$0xff] %v2603
    %2616 = vst [vmem:[#allocation19 + $0x8] sm:$0xff] %v2608
    %2617 = vst [vmem:[#allocation19 + $0x18] sm:$0xff] %v2609
    %2618 = vst [vmem:[#allocation19 + $0x28] sm:$0xff] %v2610
    %2619 = vst [vmem:[#allocation19 + $0x38] sm:$0xff] %v2611
    // Predicated region
    $region94: #{up_conv_block.1} parent=1 // pred_check
      _
    $region95: #{up_conv_block.1} parent=1 // pred_check_branch
      %2621 = sbr.rel (0) target = $region97
    $region96: #{up_conv_block.1} parent=1 // pred_region
      %s2623 = ssub.s32 1024, 1024
      %2624 = vsyncadd [#allocation6], %s2623
      %s2625 = sshll.u32 [#allocation19], 4
      %s2626 = int_to_ptr.vmem [resolvable:$true] %s2625
      %2631 = dma.vmem_to_hbm [thread:$0]  %s2626, 1024, %s14, [#allocation6], 256, 256, 16
    $region97: #{up_conv_block.1} parent=1 // pred_fallthru
      _
    // Predicated region
    $region98: #{up_conv_block.1} parent=1 // pred_check
      _
    $region99: #{up_conv_block.1} parent=1 // pred_check_branch
      %2633 = sbr.rel (0) target = $region101
    $region100: #{up_conv_block.1} parent=1 // pred_region
      %2634 = dma.done [#allocation6], 1024
    $region101: #{up_conv_block.1} parent=1 // pred_fallthru
      _
    %2635 = vsyncpa [#allocation5], 1
    %2636 = vsyncpa [#allocation8], 1
    %2637 = vsyncpa [#allocation11], 1
    %2638 = vsyncpa [#allocation14], 1
    %2639 = vsyncpa [#allocation17], 1
    %2640 = vsyncpa [#allocation6], 1

</llo_original>
